<compile_context>
chip_gen: v6e
topology: v6e:2x2x1
jax: 0.10.0
libtpu: 0.0.40
codegen_flags: <defaults>
</compile_context>

<pallas_src>
import functools

import jax
import jax.numpy as jnp
from jax.experimental import pallas as pl
from jax.experimental.pallas import tpu as pltpu

_GATE_LANES = 128  # long gates live in lanes [0,128), surv gates in [128,256)


def _round_up(v: int, m: int) -> int:
    return (v + m - 1) // m * m


def _masked_softmax(z, n_valid):
    """Softmax over the last (lane) dim restricted to the first `n_valid` lanes."""
    lane = jax.lax.broadcasted_iota(jnp.int32, z.shape, 1)
    valid = lane < n_valid
    z = jnp.where(valid, z, -jnp.inf)
    m = jnp.max(z, axis=-1, keepdims=True)
    p = jnp.where(valid, jnp.exp(z - m), 0.0)
    return p * pl.reciprocal(jnp.sum(p, axis=-1, keepdims=True), approx=True)


# -----------------------------------------------------------------------------
# Kernel 1: all experts resident (statically unrolled expert loop)
# -----------------------------------------------------------------------------
def _mmoe_kernel_unrolled(
    x_ref,        # (TM, Dm)        bf16
    w1_ref,       # (E, Dm, Dff)    bf16
    b1_ref,       # (E, 1, Dff)     f32
    w2h_ref,      # (E, Dff, Dh)    bf16   = w2[e] @ [w_long | w_surv]
    b2h_ref,      # (E, 1, Dh)      f32    = b2[e] @ [w_long | w_surv]
    wg_ref,       # (Dm, 256)       bf16   lane-aligned [long | surv] gates
    bg_ref,       # (1, 256)        f32
    bhead_ref,    # (1, Dh)         f32    = [b_long | b_surv]
    out_ref,      # (TM, Dh)        f32    cols [0:d_long]=long, [d_long]=sigmoid(surv)
    acc_ref,      # (TM, Dh)        f32    VMEM accumulator scratch
    *,
    n_expert: int,
    d_long: int,
):
    x = x_ref[...]

    # Fused, lane-aligned gating: one matmul, then per-task masked softmax.
    glog = jnp.dot(x, wg_ref[...], preferred_element_type=jnp.float32) + bg_ref[...]
    gl = _masked_softmax(glog[:, :_GATE_LANES], n_expert)   # (TM, 128)
    gs = _masked_softmax(glog[:, _GATE_LANES:], n_expert)   # (TM, 128)

    dh = out_ref.shape[-1]
    col = jax.lax.broadcasted_iota(jnp.int32, (1, dh), 1)
    long_cols = col < d_long

    acc_ref[...] = jnp.zeros_like(acc_ref)
    for e in range(n_expert):                                # static unroll (small E)
        h = jnp.dot(x, w1_ref[e], preferred_element_type=jnp.float32) + b1_ref[e]
        h = jnp.maximum(h, 0.0).astype(w2h_ref.dtype)        # ReLU, bf16
        eo = jnp.dot(h, w2h_ref[e], preferred_element_type=jnp.float32) + b2h_ref[e]
        g = jnp.where(long_cols, gl[:, e:e + 1], gs[:, e:e + 1])   # single select
        acc_ref[...] += g * eo

    pred = acc_ref[...] + bhead_ref[...]
    sig = 1.0 / (1.0 + jnp.exp(-pred))                       # exact sigmoid
    out_ref[...] = jnp.where(col == d_long, sig, pred)


# -----------------------------------------------------------------------------
# Kernel 2: expert-streaming (grid axis over experts; ~2 experts resident)
# -----------------------------------------------------------------------------
def _mmoe_kernel_stream(
    x_ref,        # (TM, Dm)        bf16
    w1_ref,       # (1, Dm, Dff)    bf16   current expert
    b1_ref,       # (1, 1, Dff)     f32
    w2h_ref,      # (1, Dff, Dh)    bf16
    b2h_ref,      # (1, 1, Dh)      f32
    wg_ref,       # (Dm, 256)       bf16
    bg_ref,       # (1, 256)        f32
    bhead_ref,    # (1, Dh)         f32
    out_ref,      # (TM, Dh)        f32
    acc_ref,      # (TM, Dh)        f32    VMEM accumulator
    gl_ref,       # (TM, 128)       f32    long gates (computed at e == 0)
    gs_ref,       # (TM, 128)       f32    surv gates
    *,
    n_expert: int,
    d_long: int,
):
    e = pl.program_id(1)
    x = x_ref[...]

    @pl.when(e == 0)
    def _():
        glog = jnp.dot(x, wg_ref[...], preferred_element_type=jnp.float32) + bg_ref[...]
        gl_ref[...] = _masked_softmax(glog[:, :_GATE_LANES], n_expert)
        gs_ref[...] = _masked_softmax(glog[:, _GATE_LANES:], n_expert)
        acc_ref[...] = jnp.zeros_like(acc_ref)

    h = jnp.dot(x, w1_ref[0], preferred_element_type=jnp.float32) + b1_ref[0]
    h = jnp.maximum(h, 0.0).astype(w2h_ref.dtype)
    eo = jnp.dot(h, w2h_ref[0], preferred_element_type=jnp.float32) + b2h_ref[0]

    dh = out_ref.shape[-1]
    col = jax.lax.broadcasted_iota(jnp.int32, (1, dh), 1)

    # Gate column for the current (dynamic) expert via a masked lane reduce.
    lane = jax.lax.broadcasted_iota(jnp.int32, (1, _GATE_LANES), 1)
    sel = (lane == e).astype(jnp.float32)
    gl_e = jnp.sum(gl_ref[...] * sel, axis=-1, keepdims=True)   # (TM, 1)
    gs_e = jnp.sum(gs_ref[...] * sel, axis=-1, keepdims=True)   # (TM, 1)
    g = jnp.where(col < d_long, gl_e, gs_e)
    acc_ref[...] += g * eo

    @pl.when(e == n_expert - 1)
    def _():
        pred = acc_ref[...] + bhead_ref[...]
        sig = 1.0 / (1.0 + jnp.exp(-pred))
        out_ref[...] = jnp.where(col == d_long, sig, pred)


# -----------------------------------------------------------------------------
# Weight preparation (folding / fusion / padding / dtype cast) — run ONCE.
# -----------------------------------------------------------------------------
def prepare_params(params, compute_dtype=jnp.bfloat16):
    w1 = jnp.asarray(params["w1"])                   # (E, d_model, d_ff)
    E, d_model, d_ff = w1.shape
    assert E <= _GATE_LANES, "n_expert must fit in one 128-lane block"
    d_long = params["w_long"].shape[1]
    d_head = d_long + 1

    dm_p = _round_up(d_model, 128)
    dff_p = _round_up(d_ff, 128)
    dh_p = _round_up(d_head, 128)

    # Fold both task heads into each expert's down-projection.
    w_head = jnp.concatenate([params["w_long"], params["w_surv"]], axis=1)   # (dm, dh)
    b_head = jnp.concatenate([params["b_long"], params["b_surv"]], axis=1)   # (1, dh)
    w2h = jnp.einsum("efd,dh->efh", params["w2"], w_head)                    # (E, dff, dh)
    b2h = jnp.einsum("ed,dh->eh", params["b2"], w_head)                      # (E, dh)

    # Fused, lane-aligned gates: long in lanes [0,128), surv in [128,256).
    wg = jnp.zeros((d_model, 2 * _GATE_LANES), jnp.float32)
    wg = wg.at[:, :E].set(params["wg_long"])
    wg = wg.at[:, _GATE_LANES:_GATE_LANES + E].set(params["wg_surv"])
    bg = jnp.zeros((1, 2 * _GATE_LANES), jnp.float32)
    bg = bg.at[:, :E].set(params["bg_long"])
    bg = bg.at[:, _GATE_LANES:_GATE_LANES + E].set(params["bg_surv"])

    def pad(a, shape):
        return jnp.pad(a, [(0, t - s) for s, t in zip(a.shape, shape)])

    prepped = dict(
        w1=pad(w1, (E, dm_p, dff_p)).astype(compute_dtype),
        b1=pad(params["b1"], (E, dff_p)).reshape(E, 1, dff_p).astype(jnp.float32),
        w2h=pad(w2h, (E, dff_p, dh_p)).astype(compute_dtype),
        b2h=pad(b2h, (E, dh_p)).reshape(E, 1, dh_p).astype(jnp.float32),
        wg=pad(wg, (dm_p, 2 * _GATE_LANES)).astype(compute_dtype),
        bg=bg.astype(jnp.float32),
        bhead=pad(b_head, (1, dh_p)).astype(jnp.float32),
    )
    meta = dict(n_expert=E, d_long=d_long, dm_p=dm_p, dff_p=dff_p, dh_p=dh_p)
    return prepped, meta


# -----------------------------------------------------------------------------
# Spec / budget helpers
# -----------------------------------------------------------------------------
def _vmem_limit_bytes():
    """Generation-aware scoped-VMEM budget: ~85% of physical, capped at 112 MiB
    (v5e/v6e: 128 MiB physical; v7x: 64 MiB per TensorCore -> ~54 MiB)."""
    try:
        cap = int(pltpu.get_tpu_info().vmem_capacity_bytes)
        return max(32 * 1024 * 1024, min(int(cap * 0.85), 112 * 1024 * 1024))
    except Exception:
        return 48 * 1024 * 1024   # conservative fallback, safe on every generation


def _const_spec(shape, n_grid_axes):
    """BlockSpec for a grid-invariant operand: whole-array block, single-buffered
    (double-buffering a block whose index never changes only doubles residency)."""
    n_dims = len(shape)
    if n_grid_axes == 1:
        idx = lambda i: (0,) * n_dims
    else:
        idx = lambda i, e: (0,) * n_dims
    try:
        return pl.BlockSpec(shape, idx, pipeline_mode=pl.Buffered(1))
    except Exception:   # older jax without pipeline_mode / Buffered(1)
        return pl.BlockSpec(shape, idx)


# -----------------------------------------------------------------------------
# Forward (called under jit with prepared weights)
# -----------------------------------------------------------------------------
def _mmoe_forward(x, pp, meta, *, row_tile, compute_dtype, expert_stream, vmem_limit):
    B, T, d_model = x.shape
    N = B * T
    E, d_long = meta["n_expert"], meta["d_long"]
    dm_p, dff_p, dh_p = meta["dm_p"], meta["dff_p"], meta["dh_p"]

    # Row tiling: big tiles amortize per-grid-step overhead, but prefer >= 2 row
    # tiles so "parallel" can shard rows across both TensorCores on v7x.
    sub = 16 if jnp.dtype(compute_dtype).itemsize < 4 else 8
    tm_cap = max(sub, _round_up(row_tile, sub))
    tm_half = max(sub, _round_up(pl.cdiv(N, 2), sub))
    tm = min(tm_cap, tm_half, max(sub, _round_up(N, sub)))
    n_pad = _round_up(N, tm)
    n_tiles = n_pad // tm

    # Zero-pad the contraction (lane) dim — required for correctness of the
    # padded matmuls (garbage lanes x zero weight rows could produce NaN*0=NaN).
    x2d = jnp.pad(x.reshape(N, d_model),
                  ((0, n_pad - N), (0, dm_p - d_model))).astype(compute_dtype)

    operands = (x2d, pp["w1"], pp["b1"], pp["w2h"], pp["b2h"],
                pp["wg"], pp["bg"], pp["bhead"])

    if not expert_stream:
        grid = (n_tiles,)
        kernel = functools.partial(_mmoe_kernel_unrolled, n_expert=E, d_long=d_long)
        in_specs = [
            pl.BlockSpec((tm, dm_p), lambda i: (i, 0)),       # x rows
            _const_spec((E, dm_p, dff_p), 1),                 # w1
            _const_spec((E, 1, dff_p), 1),                    # b1
            _const_spec((E, dff_p, dh_p), 1),                 # w2 @ heads
            _const_spec((E, 1, dh_p), 1),                     # b2 @ heads
            _const_spec((dm_p, 2 * _GATE_LANES), 1),          # fused gate weights
            _const_spec((1, 2 * _GATE_LANES), 1),             # fused gate bias
            _const_spec((1, dh_p), 1),                        # head bias
        ]
        out_spec = pl.BlockSpec((tm, dh_p), lambda i: (i, 0))
        scratch = [pltpu.VMEM((tm, dh_p), jnp.float32)]
        dim_sem = ("parallel",)
    else:
        # Stream experts through a second ("arbitrary") grid axis: only ~2
        # experts' weights resident, weight DMA pipelined behind compute.
        grid = (n_tiles, E)
        kernel = functools.partial(_mmoe_kernel_stream, n_expert=E, d_long=d_long)
        in_specs = [
            pl.BlockSpec((tm, dm_p), lambda i, e: (i, 0)),
            pl.BlockSpec((1, dm_p, dff_p), lambda i, e: (e, 0, 0)),
            pl.BlockSpec((1, 1, dff_p), lambda i, e: (e, 0, 0)),
            pl.BlockSpec((1, dff_p, dh_p), lambda i, e: (e, 0, 0)),
            pl.BlockSpec((1, 1, dh_p), lambda i, e: (e, 0, 0)),
            _const_spec((dm_p, 2 * _GATE_LANES), 2),
            _const_spec((1, 2 * _GATE_LANES), 2),
            _const_spec((1, dh_p), 2),
        ]
        out_spec = pl.BlockSpec((tm, dh_p), lambda i, e: (i, 0))
        scratch = [pltpu.VMEM((tm, dh_p), jnp.float32),
                   pltpu.VMEM((tm, _GATE_LANES), jnp.float32),
                   pltpu.VMEM((tm, _GATE_LANES), jnp.float32)]
        dim_sem = ("parallel", "arbitrary")

    out2d = pl.pallas_call(
        kernel,
        out_shape=jax.ShapeDtypeStruct((n_pad, dh_p), jnp.float32),
        grid_spec=pltpu.PrefetchScalarGridSpec(
            num_scalar_prefetch=0,
            grid=grid,
            in_specs=in_specs,
            out_specs=out_spec,
            scratch_shapes=scratch,
        ),
        compiler_params=pltpu.CompilerParams(
            dimension_semantics=dim_sem,
            vmem_limit_bytes=vmem_limit,
        ),
    )(*operands)

    long_pred = out2d[:N, :d_long].reshape(B, T, d_long)
    surv_pred = out2d[:N, d_long:d_long + 1].reshape(B, T, 1)
    return long_pred, surv_pred


# -----------------------------------------------------------------------------
# Public wrappers
# -----------------------------------------------------------------------------
def make_mmoe_head(params, *, row_tile=512, compute_dtype=jnp.bfloat16,
                   expert_stream=None):
    """Prepare (fold/fuse/pad) the weights ONCE and return a jitted forward fn."""
    pp, meta = prepare_params(params, compute_dtype)
    vmem_limit = _vmem_limit_bytes()
    if expert_stream is None:
        wbytes = (int(pp["w1"].size) * pp["w1"].dtype.itemsize
                  + int(pp["w2h"].size) * pp["w2h"].dtype.itemsize)
        expert_stream = wbytes > vmem_limit // 3   # stream experts when weights are big

    @jax.jit
    def fwd(x):
        return _mmoe_forward(x, pp, meta, row_tile=row_tile,
                             compute_dtype=compute_dtype,
                             expert_stream=expert_stream,
                             vmem_limit=vmem_limit)
    return fwd


def mmoe_head_pallas(x, params, **kwargs):
    """One-shot convenience wrapper (prefer make_mmoe_head to cache prepped weights)."""
    return make_mmoe_head(params, **kwargs)(x)


# -----------------------------------------------------------------------------
# Pure-JAX reference (mirrors the PyTorch forward, full f32)
# -----------------------------------------------------------------------------
def mmoe_head_ref(x, params):
    w1, b1, w2, b2 = params["w1"], params["b1"], params["w2"], params["b2"]
    h = jnp.maximum(jnp.einsum("btd,edf->btef", x, w1) + b1[None, None], 0.0)
    expert_outs = jnp.einsum("btef,efd->bted", h, w2) + b2[None, None]

    gl = jax.nn.softmax(x @ params["wg_long"] + params["bg_long"][0], axis=-1)
    gs = jax.nn.softmax(x @ params["wg_surv"] + params["bg_surv"][0], axis=-1)

    long_comb = jnp.sum(expert_outs * gl[..., None], axis=2)
    surv_comb = jnp.sum(expert_outs * gs[..., None], axis=2)

    long_pred = long_comb @ params["w_long"] + params["b_long"][0]
    surv_pred = jax.nn.sigmoid(surv_comb @ params["w_surv"] + params["b_surv"][0])
    return long_pred, surv_pred


def init_params(key, d_model, d_ff, n_expert, d_long):
    ks = jax.random.split(key, 12)
    s = 0.1
    return {
        "w1": s * jax.random.normal(ks[0], (n_expert, d_model, d_ff), jnp.float32),
        "b1": s * jax.random.normal(ks[1], (n_expert, d_ff), jnp.float32),
        "w2": s * jax.random.normal(ks[2], (n_expert, d_ff, d_model), jnp.float32),
        "b2": s * jax.random.normal(ks[3], (n_expert, d_model), jnp.float32),
        "wg_long": s * jax.random.normal(ks[4], (d_model, n_expert), jnp.float32),
        "bg_long": s * jax.random.normal(ks[5], (1, n_expert), jnp.float32),
        "wg_surv": s * jax.random.normal(ks[6], (d_model, n_expert), jnp.float32),
        "bg_surv": s * jax.random.normal(ks[7], (1, n_expert), jnp.float32),
        "w_long": s * jax.random.normal(ks[8], (d_model, d_long), jnp.float32),
        "b_long": s * jax.random.normal(ks[9], (1, d_long), jnp.float32),
        "w_surv": s * jax.random.normal(ks[10], (d_model, 1), jnp.float32),
        "b_surv": s * jax.random.normal(ks[11], (1, 1), jnp.float32),
    }


if __name__ == "__main__":
    # Small, forward-consistent shapes: x: [B, T, d_model] (N=18 exercises row
    # padding and a 2-tile row grid).
    B, T, d_model, d_ff, n_expert, d_long = 2, 9, 32, 64, 4, 8

    key = jax.random.PRNGKey(0)
    kx, kp = jax.random.split(key)
    x = jax.random.normal(kx, (B, T, d_model), jnp.float32)
    params = init_params(kp, d_model, d_ff, n_expert, d_long)

    long_ref, surv_ref = mmoe_head_ref(x, params)

    # Path 1: all experts resident (auto-selected for small weight sets).
    fwd = make_mmoe_head(params)
    long_pred, surv_pred = fwd(x)
    jax.block_until_ready((long_pred, surv_pred))
    assert long_pred.shape == (B, T, d_long)
    assert surv_pred.shape == (B, T, 1)
    # bf16 compute + head folding reorders float accumulation -> looser tolerance.
    assert jnp.allclose(long_pred, long_ref, atol=3e-2, rtol=3e-2)
    assert jnp.allclose(surv_pred, surv_ref, atol=3e-2, rtol=3e-2)

    # Path 2: expert-streaming grid (auto-selected for production-size E/d_ff);
    # exercised explicitly here for correctness.
    fwd_stream = make_mmoe_head(params, expert_stream=True)
    long_s, surv_s = fwd_stream(x)
    jax.block_until_ready((long_s, surv_s))
    assert jnp.allclose(long_s, long_ref, atol=3e-2, rtol=3e-2)
    assert jnp.allclose(surv_s, surv_ref, atol=3e-2, rtol=3e-2)

    print("KERNEL_OK")
</pallas_src>

<mosaic_0001>
module attributes {stable_mosaic.version = 11 : i64} {
  func.func @_mmoe_kernel_unrolled(%arg0: i32, %arg1: memref<16x128xbf16, #tpu.memory_space<vmem>>, %arg2: memref<4x128x128xbf16, #tpu.memory_space<vmem>>, %arg3: memref<4x1x128xf32, #tpu.memory_space<vmem>>, %arg4: memref<4x128x128xbf16, #tpu.memory_space<vmem>>, %arg5: memref<4x1x128xf32, #tpu.memory_space<vmem>>, %arg6: memref<128x256xbf16, #tpu.memory_space<vmem>>, %arg7: memref<1x256xf32, #tpu.memory_space<vmem>>, %arg8: memref<1x128xf32, #tpu.memory_space<vmem>>, %arg9: memref<16x128xf32, #tpu.memory_space<vmem>>, %arg10: memref<16x128xf32, #tpu.memory_space<vmem>>) attributes {dimension_semantics = [#tpu.dimension_semantics<parallel>], iteration_bounds = array<i64: 2>, scalar_prefetch = 0 : i64, scratch_operands = 1 : i64, tpu.core_type = #tpu.core_type<tc>, window_params = [{transform_indices = @transform_0, window_bounds = array<i64: 16, 128>}, {pipeline_mode = #tpu.pipeline_mode<synchronous>, transform_indices = @transform_1, window_bounds = array<i64: 4, 128, 128>}, {pipeline_mode = #tpu.pipeline_mode<synchronous>, transform_indices = @transform_2, window_bounds = array<i64: 4, 1, 128>}, {pipeline_mode = #tpu.pipeline_mode<synchronous>, transform_indices = @transform_3, window_bounds = array<i64: 4, 128, 128>}, {pipeline_mode = #tpu.pipeline_mode<synchronous>, transform_indices = @transform_4, window_bounds = array<i64: 4, 1, 128>}, {pipeline_mode = #tpu.pipeline_mode<synchronous>, transform_indices = @transform_5, window_bounds = array<i64: 128, 256>}, {pipeline_mode = #tpu.pipeline_mode<synchronous>, transform_indices = @transform_6, window_bounds = array<i64: 1, 256>}, {pipeline_mode = #tpu.pipeline_mode<synchronous>, transform_indices = @transform_7, window_bounds = array<i64: 1, 128>}, {transform_indices = @transform_8, window_bounds = array<i64: 16, 128>}]} {
    %c0 = arith.constant 0 : index
    %c0_0 = arith.constant 0 : index
    %0 = vector.load %arg1[%c0, %c0_0] : memref<16x128xbf16, #tpu.memory_space<vmem>>, vector<16x128xbf16>
    %c0_1 = arith.constant 0 : index
    %c0_2 = arith.constant 0 : index
    %1 = vector.load %arg6[%c0_1, %c0_2] : memref<128x256xbf16, #tpu.memory_space<vmem>>, vector<128x256xbf16>
    %cst = arith.constant dense<0.000000e+00> : vector<16x256xf32>
    %2 = tpu.matmul %0, %1, %cst {dimension_numbers = #tpu.dot_dimension_numbers<[1], [0], [0], [1], [0, 0, 1, 1], [], []>} : vector<16x128xbf16>, vector<128x256xbf16>, vector<16x256xf32> -> vector<16x256xf32>
    %c0_3 = arith.constant 0 : index
    %c0_4 = arith.constant 0 : index
    %3 = vector.load %arg7[%c0_3, %c0_4] : memref<1x256xf32, #tpu.memory_space<vmem>>, vector<1x256xf32>
    %4 = vector.broadcast %3 : vector<1x256xf32> to vector<16x256xf32>
    %5 = arith.addf %2, %4 : vector<16x256xf32>
    %6 = vector.extract_strided_slice %5 {offsets = [0, 0], sizes = [16, 128], strides = [1, 1]} : vector<16x256xf32> to vector<16x128xf32>
    %7 = tpu.iota {dimensions = array<i32: 1>} : vector<16x128xi32>
    %c4_i32 = arith.constant 4 : i32
    %8 = vector.broadcast %c4_i32 : i32 to vector<16x128xi32>
    %9 = arith.cmpi slt, %7, %8 : vector<16x128xi32>
    %cst_5 = arith.constant 0xFF800000 : f32
    %10 = vector.broadcast %cst_5 : f32 to vector<16x128xf32>
    %11 = arith.select %9, %6, %10 : vector<16x128xi1>, vector<16x128xf32>
    %cst_6 = arith.constant dense<0xFF800000> : vector<16xf32>
    %12 = vector.multi_reduction <maximumf>, %11, %cst_6 [1] : vector<16x128xf32> to vector<16xf32>
    %13 = vector.shape_cast %12 : vector<16xf32> to vector<16x1xf32>
    %14 = vector.broadcast %13 : vector<16x1xf32> to vector<16x128xf32>
    %15 = arith.subf %11, %14 : vector<16x128xf32>
    %16 = math.exp %15 : vector<16x128xf32>
    %cst_7 = arith.constant 0.000000e+00 : f32
    %17 = vector.broadcast %cst_7 : f32 to vector<16x128xf32>
    %18 = arith.select %9, %16, %17 : vector<16x128xi1>, vector<16x128xf32>
    %cst_8 = arith.constant dense<0.000000e+00> : vector<16xf32>
    %19 = vector.multi_reduction <add>, %18, %cst_8 [1] : vector<16x128xf32> to vector<16xf32>
    %20 = vector.shape_cast %19 : vector<16xf32> to vector<16x1xf32>
    %21 = tpu.reciprocal %20 {approx = true} : vector<16x1xf32> -> vector<16x1xf32>
    %22 = vector.broadcast %21 : vector<16x1xf32> to vector<16x128xf32>
    %23 = arith.mulf %18, %22 : vector<16x128xf32>
    %24 = vector.extract_strided_slice %5 {offsets = [0, 128], sizes = [16, 128], strides = [1, 1]} : vector<16x256xf32> to vector<16x128xf32>
    %25 = tpu.iota {dimensions = array<i32: 1>} : vector<16x128xi32>
    %c4_i32_9 = arith.constant 4 : i32
    %26 = vector.broadcast %c4_i32_9 : i32 to vector<16x128xi32>
    %27 = arith.cmpi slt, %25, %26 : vector<16x128xi32>
    %cst_10 = arith.constant 0xFF800000 : f32
    %28 = vector.broadcast %cst_10 : f32 to vector<16x128xf32>
    %29 = arith.select %27, %24, %28 : vector<16x128xi1>, vector<16x128xf32>
    %cst_11 = arith.constant dense<0xFF800000> : vector<16xf32>
    %30 = vector.multi_reduction <maximumf>, %29, %cst_11 [1] : vector<16x128xf32> to vector<16xf32>
    %31 = vector.shape_cast %30 : vector<16xf32> to vector<16x1xf32>
    %32 = vector.broadcast %31 : vector<16x1xf32> to vector<16x128xf32>
    %33 = arith.subf %29, %32 : vector<16x128xf32>
    %34 = math.exp %33 : vector<16x128xf32>
    %cst_12 = arith.constant 0.000000e+00 : f32
    %35 = vector.broadcast %cst_12 : f32 to vector<16x128xf32>
    %36 = arith.select %27, %34, %35 : vector<16x128xi1>, vector<16x128xf32>
    %cst_13 = arith.constant dense<0.000000e+00> : vector<16xf32>
    %37 = vector.multi_reduction <add>, %36, %cst_13 [1] : vector<16x128xf32> to vector<16xf32>
    %38 = vector.shape_cast %37 : vector<16xf32> to vector<16x1xf32>
    %39 = tpu.reciprocal %38 {approx = true} : vector<16x1xf32> -> vector<16x1xf32>
    %40 = vector.broadcast %39 : vector<16x1xf32> to vector<16x128xf32>
    %41 = arith.mulf %36, %40 : vector<16x128xf32>
    %42 = tpu.iota {dimensions = array<i32: 1>} : vector<1x128xi32>
    %c8_i32 = arith.constant 8 : i32
    %43 = vector.broadcast %c8_i32 : i32 to vector<1x128xi32>
    %44 = arith.cmpi slt, %42, %43 : vector<1x128xi32>
    %cst_14 = arith.constant 0.000000e+00 : f32
    %45 = vector.broadcast %cst_14 : f32 to vector<16x128xf32>
    %c0_15 = arith.constant 0 : index
    %c0_16 = arith.constant 0 : index
    %46 = vector.load %arg10[%c0_15, %c0_16] : memref<16x128xf32, #tpu.memory_space<vmem>>, vector<16x128xf32>
    tpu.vector_store %arg10[%c0_15, %c0_16], %45 {strides = array<i32>} : memref<16x128xf32, #tpu.memory_space<vmem>>, vector<16x128xf32>,
    %c0_17 = arith.constant 0 : index
    %c0_18 = arith.constant 0 : index
    %c0_19 = arith.constant 0 : index
    %47 = vector.load %arg2[%c0_17, %c0_18, %c0_19] : memref<4x128x128xbf16, #tpu.memory_space<vmem>>, vector<1x128x128xbf16>
    %48 = vector.shape_cast %47 : vector<1x128x128xbf16> to vector<128x128xbf16>
    %cst_20 = arith.constant dense<0.000000e+00> : vector<16x128xf32>
    %49 = tpu.matmul %0, %48, %cst_20 {dimension_numbers = #tpu.dot_dimension_numbers<[1], [0], [0], [1], [0, 0, 1, 1], [], []>} : vector<16x128xbf16>, vector<128x128xbf16>, vector<16x128xf32> -> vector<16x128xf32>
    %c0_21 = arith.constant 0 : index
    %c0_22 = arith.constant 0 : index
    %c0_23 = arith.constant 0 : index
    %50 = vector.load %arg3[%c0_21, %c0_22, %c0_23] : memref<4x1x128xf32, #tpu.memory_space<vmem>>, vector<1x1x128xf32>
    %51 = vector.shape_cast %50 : vector<1x1x128xf32> to vector<1x128xf32>
    %52 = vector.broadcast %51 : vector<1x128xf32> to vector<16x128xf32>
    %53 = arith.addf %49, %52 : vector<16x128xf32>
    %cst_24 = arith.constant 0.000000e+00 : f32
    %54 = vector.broadcast %cst_24 : f32 to vector<16x128xf32>
    %55 = arith.maximumf %53, %54 : vector<16x128xf32>
    %56 = arith.truncf %55 : vector<16x128xf32> to vector<16x128xbf16>
    %c0_25 = arith.constant 0 : index
    %c0_26 = arith.constant 0 : index
    %c0_27 = arith.constant 0 : index
    %57 = vector.load %arg4[%c0_25, %c0_26, %c0_27] : memref<4x128x128xbf16, #tpu.memory_space<vmem>>, vector<1x128x128xbf16>
    %58 = vector.shape_cast %57 : vector<1x128x128xbf16> to vector<128x128xbf16>
    %cst_28 = arith.constant dense<0.000000e+00> : vector<16x128xf32>
    %59 = tpu.matmul %56, %58, %cst_28 {dimension_numbers = #tpu.dot_dimension_numbers<[1], [0], [0], [1], [0, 0, 1, 1], [], []>} : vector<16x128xbf16>, vector<128x128xbf16>, vector<16x128xf32> -> vector<16x128xf32>
    %c0_29 = arith.constant 0 : index
    %c0_30 = arith.constant 0 : index
    %c0_31 = arith.constant 0 : index
    %60 = vector.load %arg5[%c0_29, %c0_30, %c0_31] : memref<4x1x128xf32, #tpu.memory_space<vmem>>, vector<1x1x128xf32>
    %61 = vector.shape_cast %60 : vector<1x1x128xf32> to vector<1x128xf32>
    %62 = vector.broadcast %61 : vector<1x128xf32> to vector<16x128xf32>
    %63 = arith.addf %59, %62 : vector<16x128xf32>
    %64 = vector.extract_strided_slice %23 {offsets = [0, 0], sizes = [16, 1], strides = [1, 1]} : vector<16x128xf32> to vector<16x1xf32>
    %65 = vector.extract_strided_slice %41 {offsets = [0, 0], sizes = [16, 1], strides = [1, 1]} : vector<16x128xf32> to vector<16x1xf32>
    %66 = vector.shape_cast %44 : vector<1x128xi1> to vector<1x128xi1>
    %67 = vector.broadcast %66 : vector<1x128xi1> to vector<16x128xi1>
    %68 = vector.shape_cast %64 : vector<16x1xf32> to vector<16x1xf32>
    %69 = vector.broadcast %68 : vector<16x1xf32> to vector<16x128xf32>
    %70 = vector.shape_cast %65 : vector<16x1xf32> to vector<16x1xf32>
    %71 = vector.broadcast %70 : vector<16x1xf32> to vector<16x128xf32>
    %72 = arith.select %67, %69, %71 : vector<16x128xi1>, vector<16x128xf32>
    %c0_32 = arith.constant 0 : index
    %c0_33 = arith.constant 0 : index
    %73 = vector.load %arg10[%c0_32, %c0_33] : memref<16x128xf32, #tpu.memory_space<vmem>>, vector<16x128xf32>
    %74 = arith.mulf %72, %63 : vector<16x128xf32>
    %75 = arith.addf %73, %74 : vector<16x128xf32>
    %c0_34 = arith.constant 0 : index
    %c0_35 = arith.constant 0 : index
    %76 = vector.load %arg10[%c0_34, %c0_35] : memref<16x128xf32, #tpu.memory_space<vmem>>, vector<16x128xf32>
    tpu.vector_store %arg10[%c0_34, %c0_35], %75 {strides = array<i32>} : memref<16x128xf32, #tpu.memory_space<vmem>>, vector<16x128xf32>,
    %c1 = arith.constant 1 : index
    %c0_36 = arith.constant 0 : index
    %c0_37 = arith.constant 0 : index
    %77 = vector.load %arg2[%c1, %c0_36, %c0_37] : memref<4x128x128xbf16, #tpu.memory_space<vmem>>, vector<1x128x128xbf16>
    %78 = vector.shape_cast %77 : vector<1x128x128xbf16> to vector<128x128xbf16>
    %cst_38 = arith.constant dense<0.000000e+00> : vector<16x128xf32>
    %79 = tpu.matmul %0, %78, %cst_38 {dimension_numbers = #tpu.dot_dimension_numbers<[1], [0], [0], [1], [0, 0, 1, 1], [], []>} : vector<16x128xbf16>, vector<128x128xbf16>, vector<16x128xf32> -> vector<16x128xf32>
    %c1_39 = arith.constant 1 : index
    %c0_40 = arith.constant 0 : index
    %c0_41 = arith.constant 0 : index
    %80 = vector.load %arg3[%c1_39, %c0_40, %c0_41] : memref<4x1x128xf32, #tpu.memory_space<vmem>>, vector<1x1x128xf32>
    %81 = vector.shape_cast %80 : vector<1x1x128xf32> to vector<1x128xf32>
    %82 = vector.broadcast %81 : vector<1x128xf32> to vector<16x128xf32>
    %83 = arith.addf %79, %82 : vector<16x128xf32>
    %cst_42 = arith.constant 0.000000e+00 : f32
    %84 = vector.broadcast %cst_42 : f32 to vector<16x128xf32>
    %85 = arith.maximumf %83, %84 : vector<16x128xf32>
    %86 = arith.truncf %85 : vector<16x128xf32> to vector<16x128xbf16>
    %c1_43 = arith.constant 1 : index
    %c0_44 = arith.constant 0 : index
    %c0_45 = arith.constant 0 : index
    %87 = vector.load %arg4[%c1_43, %c0_44, %c0_45] : memref<4x128x128xbf16, #tpu.memory_space<vmem>>, vector<1x128x128xbf16>
    %88 = vector.shape_cast %87 : vector<1x128x128xbf16> to vector<128x128xbf16>
    %cst_46 = arith.constant dense<0.000000e+00> : vector<16x128xf32>
    %89 = tpu.matmul %86, %88, %cst_46 {dimension_numbers = #tpu.dot_dimension_numbers<[1], [0], [0], [1], [0, 0, 1, 1], [], []>} : vector<16x128xbf16>, vector<128x128xbf16>, vector<16x128xf32> -> vector<16x128xf32>
    %c1_47 = arith.constant 1 : index
    %c0_48 = arith.constant 0 : index
    %c0_49 = arith.constant 0 : index
    %90 = vector.load %arg5[%c1_47, %c0_48, %c0_49] : memref<4x1x128xf32, #tpu.memory_space<vmem>>, vector<1x1x128xf32>
    %91 = vector.shape_cast %90 : vector<1x1x128xf32> to vector<1x128xf32>
    %92 = vector.broadcast %91 : vector<1x128xf32> to vector<16x128xf32>
    %93 = arith.addf %89, %92 : vector<16x128xf32>
    %94 = vector.extract_strided_slice %23 {offsets = [0, 1], sizes = [16, 1], strides = [1, 1]} : vector<16x128xf32> to vector<16x1xf32>
    %95 = vector.extract_strided_slice %41 {offsets = [0, 1], sizes = [16, 1], strides = [1, 1]} : vector<16x128xf32> to vector<16x1xf32>
    %96 = vector.shape_cast %44 : vector<1x128xi1> to vector<1x128xi1>
    %97 = vector.broadcast %96 : vector<1x128xi1> to vector<16x128xi1>
    %98 = vector.shape_cast %94 : vector<16x1xf32> to vector<16x1xf32>
    %99 = vector.broadcast %98 : vector<16x1xf32> to vector<16x128xf32>
    %100 = vector.shape_cast %95 : vector<16x1xf32> to vector<16x1xf32>
    %101 = vector.broadcast %100 : vector<16x1xf32> to vector<16x128xf32>
    %102 = arith.select %97, %99, %101 : vector<16x128xi1>, vector<16x128xf32>
    %c0_50 = arith.constant 0 : index
    %c0_51 = arith.constant 0 : index
    %103 = vector.load %arg10[%c0_50, %c0_51] : memref<16x128xf32, #tpu.memory_space<vmem>>, vector<16x128xf32>
    %104 = arith.mulf %102, %93 : vector<16x128xf32>
    %105 = arith.addf %103, %104 : vector<16x128xf32>
    %c0_52 = arith.constant 0 : index
    %c0_53 = arith.constant 0 : index
    %106 = vector.load %arg10[%c0_52, %c0_53] : memref<16x128xf32, #tpu.memory_space<vmem>>, vector<16x128xf32>
    tpu.vector_store %arg10[%c0_52, %c0_53], %105 {strides = array<i32>} : memref<16x128xf32, #tpu.memory_space<vmem>>, vector<16x128xf32>,
    %c2 = arith.constant 2 : index
    %c0_54 = arith.constant 0 : index
    %c0_55 = arith.constant 0 : index
    %107 = vector.load %arg2[%c2, %c0_54, %c0_55] : memref<4x128x128xbf16, #tpu.memory_space<vmem>>, vector<1x128x128xbf16>
    %108 = vector.shape_cast %107 : vector<1x128x128xbf16> to vector<128x128xbf16>
    %cst_56 = arith.constant dense<0.000000e+00> : vector<16x128xf32>
    %109 = tpu.matmul %0, %108, %cst_56 {dimension_numbers = #tpu.dot_dimension_numbers<[1], [0], [0], [1], [0, 0, 1, 1], [], []>} : vector<16x128xbf16>, vector<128x128xbf16>, vector<16x128xf32> -> vector<16x128xf32>
    %c2_57 = arith.constant 2 : index
    %c0_58 = arith.constant 0 : index
    %c0_59 = arith.constant 0 : index
    %110 = vector.load %arg3[%c2_57, %c0_58, %c0_59] : memref<4x1x128xf32, #tpu.memory_space<vmem>>, vector<1x1x128xf32>
    %111 = vector.shape_cast %110 : vector<1x1x128xf32> to vector<1x128xf32>
    %112 = vector.broadcast %111 : vector<1x128xf32> to vector<16x128xf32>
    %113 = arith.addf %109, %112 : vector<16x128xf32>
    %cst_60 = arith.constant 0.000000e+00 : f32
    %114 = vector.broadcast %cst_60 : f32 to vector<16x128xf32>
    %115 = arith.maximumf %113, %114 : vector<16x128xf32>
    %116 = arith.truncf %115 : vector<16x128xf32> to vector<16x128xbf16>
    %c2_61 = arith.constant 2 : index
    %c0_62 = arith.constant 0 : index
    %c0_63 = arith.constant 0 : index
    %117 = vector.load %arg4[%c2_61, %c0_62, %c0_63] : memref<4x128x128xbf16, #tpu.memory_space<vmem>>, vector<1x128x128xbf16>
    %118 = vector.shape_cast %117 : vector<1x128x128xbf16> to vector<128x128xbf16>
    %cst_64 = arith.constant dense<0.000000e+00> : vector<16x128xf32>
    %119 = tpu.matmul %116, %118, %cst_64 {dimension_numbers = #tpu.dot_dimension_numbers<[1], [0], [0], [1], [0, 0, 1, 1], [], []>} : vector<16x128xbf16>, vector<128x128xbf16>, vector<16x128xf32> -> vector<16x128xf32>
    %c2_65 = arith.constant 2 : index
    %c0_66 = arith.constant 0 : index
    %c0_67 = arith.constant 0 : index
    %120 = vector.load %arg5[%c2_65, %c0_66, %c0_67] : memref<4x1x128xf32, #tpu.memory_space<vmem>>, vector<1x1x128xf32>
    %121 = vector.shape_cast %120 : vector<1x1x128xf32> to vector<1x128xf32>
    %122 = vector.broadcast %121 : vector<1x128xf32> to vector<16x128xf32>
    %123 = arith.addf %119, %122 : vector<16x128xf32>
    %124 = vector.extract_strided_slice %23 {offsets = [0, 2], sizes = [16, 1], strides = [1, 1]} : vector<16x128xf32> to vector<16x1xf32>
    %125 = vector.extract_strided_slice %41 {offsets = [0, 2], sizes = [16, 1], strides = [1, 1]} : vector<16x128xf32> to vector<16x1xf32>
    %126 = vector.shape_cast %44 : vector<1x128xi1> to vector<1x128xi1>
    %127 = vector.broadcast %126 : vector<1x128xi1> to vector<16x128xi1>
    %128 = vector.shape_cast %124 : vector<16x1xf32> to vector<16x1xf32>
    %129 = vector.broadcast %128 : vector<16x1xf32> to vector<16x128xf32>
    %130 = vector.shape_cast %125 : vector<16x1xf32> to vector<16x1xf32>
    %131 = vector.broadcast %130 : vector<16x1xf32> to vector<16x128xf32>
    %132 = arith.select %127, %129, %131 : vector<16x128xi1>, vector<16x128xf32>
    %c0_68 = arith.constant 0 : index
    %c0_69 = arith.constant 0 : index
    %133 = vector.load %arg10[%c0_68, %c0_69] : memref<16x128xf32, #tpu.memory_space<vmem>>, vector<16x128xf32>
    %134 = arith.mulf %132, %123 : vector<16x128xf32>
    %135 = arith.addf %133, %134 : vector<16x128xf32>
    %c0_70 = arith.constant 0 : index
    %c0_71 = arith.constant 0 : index
    %136 = vector.load %arg10[%c0_70, %c0_71] : memref<16x128xf32, #tpu.memory_space<vmem>>, vector<16x128xf32>
    tpu.vector_store %arg10[%c0_70, %c0_71], %135 {strides = array<i32>} : memref<16x128xf32, #tpu.memory_space<vmem>>, vector<16x128xf32>,
    %c3 = arith.constant 3 : index
    %c0_72 = arith.constant 0 : index
    %c0_73 = arith.constant 0 : index
    %137 = vector.load %arg2[%c3, %c0_72, %c0_73] : memref<4x128x128xbf16, #tpu.memory_space<vmem>>, vector<1x128x128xbf16>
    %138 = vector.shape_cast %137 : vector<1x128x128xbf16> to vector<128x128xbf16>
    %cst_74 = arith.constant dense<0.000000e+00> : vector<16x128xf32>
    %139 = tpu.matmul %0, %138, %cst_74 {dimension_numbers = #tpu.dot_dimension_numbers<[1], [0], [0], [1], [0, 0, 1, 1], [], []>} : vector<16x128xbf16>, vector<128x128xbf16>, vector<16x128xf32> -> vector<16x128xf32>
    %c3_75 = arith.constant 3 : index
    %c0_76 = arith.constant 0 : index
    %c0_77 = arith.constant 0 : index
    %140 = vector.load %arg3[%c3_75, %c0_76, %c0_77] : memref<4x1x128xf32, #tpu.memory_space<vmem>>, vector<1x1x128xf32>
    %141 = vector.shape_cast %140 : vector<1x1x128xf32> to vector<1x128xf32>
    %142 = vector.broadcast %141 : vector<1x128xf32> to vector<16x128xf32>
    %143 = arith.addf %139, %142 : vector<16x128xf32>
    %cst_78 = arith.constant 0.000000e+00 : f32
    %144 = vector.broadcast %cst_78 : f32 to vector<16x128xf32>
    %145 = arith.maximumf %143, %144 : vector<16x128xf32>
    %146 = arith.truncf %145 : vector<16x128xf32> to vector<16x128xbf16>
    %c3_79 = arith.constant 3 : index
    %c0_80 = arith.constant 0 : index
    %c0_81 = arith.constant 0 : index
    %147 = vector.load %arg4[%c3_79, %c0_80, %c0_81] : memref<4x128x128xbf16, #tpu.memory_space<vmem>>, vector<1x128x128xbf16>
    %148 = vector.shape_cast %147 : vector<1x128x128xbf16> to vector<128x128xbf16>
    %cst_82 = arith.constant dense<0.000000e+00> : vector<16x128xf32>
    %149 = tpu.matmul %146, %148, %cst_82 {dimension_numbers = #tpu.dot_dimension_numbers<[1], [0], [0], [1], [0, 0, 1, 1], [], []>} : vector<16x128xbf16>, vector<128x128xbf16>, vector<16x128xf32> -> vector<16x128xf32>
    %c3_83 = arith.constant 3 : index
    %c0_84 = arith.constant 0 : index
    %c0_85 = arith.constant 0 : index
    %150 = vector.load %arg5[%c3_83, %c0_84, %c0_85] : memref<4x1x128xf32, #tpu.memory_space<vmem>>, vector<1x1x128xf32>
    %151 = vector.shape_cast %150 : vector<1x1x128xf32> to vector<1x128xf32>
    %152 = vector.broadcast %151 : vector<1x128xf32> to vector<16x128xf32>
    %153 = arith.addf %149, %152 : vector<16x128xf32>
    %154 = vector.extract_strided_slice %23 {offsets = [0, 3], sizes = [16, 1], strides = [1, 1]} : vector<16x128xf32> to vector<16x1xf32>
    %155 = vector.extract_strided_slice %41 {offsets = [0, 3], sizes = [16, 1], strides = [1, 1]} : vector<16x128xf32> to vector<16x1xf32>
    %156 = vector.shape_cast %44 : vector<1x128xi1> to vector<1x128xi1>
    %157 = vector.broadcast %156 : vector<1x128xi1> to vector<16x128xi1>
    %158 = vector.shape_cast %154 : vector<16x1xf32> to vector<16x1xf32>
    %159 = vector.broadcast %158 : vector<16x1xf32> to vector<16x128xf32>
    %160 = vector.shape_cast %155 : vector<16x1xf32> to vector<16x1xf32>
    %161 = vector.broadcast %160 : vector<16x1xf32> to vector<16x128xf32>
    %162 = arith.select %157, %159, %161 : vector<16x128xi1>, vector<16x128xf32>
    %c0_86 = arith.constant 0 : index
    %c0_87 = arith.constant 0 : index
    %163 = vector.load %arg10[%c0_86, %c0_87] : memref<16x128xf32, #tpu.memory_space<vmem>>, vector<16x128xf32>
    %164 = arith.mulf %162, %153 : vector<16x128xf32>
    %165 = arith.addf %163, %164 : vector<16x128xf32>
    %c0_88 = arith.constant 0 : index
    %c0_89 = arith.constant 0 : index
    %166 = vector.load %arg10[%c0_88, %c0_89] : memref<16x128xf32, #tpu.memory_space<vmem>>, vector<16x128xf32>
    tpu.vector_store %arg10[%c0_88, %c0_89], %165 {strides = array<i32>} : memref<16x128xf32, #tpu.memory_space<vmem>>, vector<16x128xf32>,
    %c0_90 = arith.constant 0 : index
    %c0_91 = arith.constant 0 : index
    %167 = vector.load %arg10[%c0_90, %c0_91] : memref<16x128xf32, #tpu.memory_space<vmem>>, vector<16x128xf32>
    %c0_92 = arith.constant 0 : index
    %c0_93 = arith.constant 0 : index
    %168 = vector.load %arg8[%c0_92, %c0_93] : memref<1x128xf32, #tpu.memory_space<vmem>>, vector<1x128xf32>
    %169 = vector.broadcast %168 : vector<1x128xf32> to vector<16x128xf32>
    %170 = arith.addf %167, %169 : vector<16x128xf32>
    %cst_94 = arith.constant 0.000000e+00 : f32
    %171 = vector.broadcast %cst_94 : f32 to vector<16x128xf32>
    %172 = arith.subf %171, %170 : vector<16x128xf32>
    %173 = math.exp %172 : vector<16x128xf32>
    %cst_95 = arith.constant 1.000000e+00 : f32
    %174 = vector.broadcast %cst_95 : f32 to vector<16x128xf32>
    %175 = arith.addf %174, %173 : vector<16x128xf32>
    %cst_96 = arith.constant 1.000000e+00 : f32
    %176 = vector.broadcast %cst_96 : f32 to vector<16x128xf32>
    %177 = arith.divf %176, %175 : vector<16x128xf32>
    %c8_i32_97 = arith.constant 8 : i32
    %178 = vector.broadcast %c8_i32_97 : i32 to vector<1x128xi32>
    %179 = arith.cmpi eq, %42, %178 : vector<1x128xi32>
    %180 = vector.shape_cast %179 : vector<1x128xi1> to vector<1x128xi1>
    %181 = vector.broadcast %180 : vector<1x128xi1> to vector<16x128xi1>
    %182 = arith.select %181, %177, %170 : vector<16x128xi1>, vector<16x128xf32>
    %c0_98 = arith.constant 0 : index
    %c0_99 = arith.constant 0 : index
    %183 = vector.load %arg9[%c0_98, %c0_99] : memref<16x128xf32, #tpu.memory_space<vmem>>, vector<16x128xf32>
    tpu.vector_store %arg9[%c0_98, %c0_99], %182 {strides = array<i32>} : memref<16x128xf32, #tpu.memory_space<vmem>>, vector<16x128xf32>,
    return
  }
  func.func @transform_0(%arg0: i32) -> (i32, i32) {
    %c0_i32 = arith.constant 0 : i32
    %c0_i32_0 = arith.constant 0 : i32
    return %arg0, %c0_i32 : i32, i32
  }
  func.func @transform_1(%arg0: i32) -> (i32, i32, i32) {
    %c0_i32 = arith.constant 0 : i32
    %c0_i32_0 = arith.constant 0 : i32
    %c0_i32_1 = arith.constant 0 : i32
    %c0_i32_2 = arith.constant 0 : i32
    return %c0_i32, %c0_i32_0, %c0_i32_1 : i32, i32, i32
  }
  func.func @transform_2(%arg0: i32) -> (i32, i32, i32) {
    %c0_i32 = arith.constant 0 : i32
    %c0_i32_0 = arith.constant 0 : i32
    %c0_i32_1 = arith.constant 0 : i32
    %c0_i32_2 = arith.constant 0 : i32
    return %c0_i32, %c0_i32_0, %c0_i32_1 : i32, i32, i32
  }
  func.func @transform_3(%arg0: i32) -> (i32, i32, i32) {
    %c0_i32 = arith.constant 0 : i32
    %c0_i32_0 = arith.constant 0 : i32
    %c0_i32_1 = arith.constant 0 : i32
    %c0_i32_2 = arith.constant 0 : i32
    return %c0_i32, %c0_i32_0, %c0_i32_1 : i32, i32, i32
  }
  func.func @transform_4(%arg0: i32) -> (i32, i32, i32) {
    %c0_i32 = arith.constant 0 : i32
    %c0_i32_0 = arith.constant 0 : i32
    %c0_i32_1 = arith.constant 0 : i32
    %c0_i32_2 = arith.constant 0 : i32
    return %c0_i32, %c0_i32_0, %c0_i32_1 : i32, i32, i32
  }
  func.func @transform_5(%arg0: i32) -> (i32, i32) {
    %c0_i32 = arith.constant 0 : i32
    %c0_i32_0 = arith.constant 0 : i32
    %c0_i32_1 = arith.constant 0 : i32
    return %c0_i32, %c0_i32_0 : i32, i32
  }
  func.func @transform_6(%arg0: i32) -> (i32, i32) {
    %c0_i32 = arith.constant 0 : i32
    %c0_i32_0 = arith.constant 0 : i32
    %c0_i32_1 = arith.constant 0 : i32
    return %c0_i32, %c0_i32_0 : i32, i32
  }
  func.func @transform_7(%arg0: i32) -> (i32, i32) {
    %c0_i32 = arith.constant 0 : i32
    %c0_i32_0 = arith.constant 0 : i32
    %c0_i32_1 = arith.constant 0 : i32
    return %c0_i32, %c0_i32_0 : i32, i32
  }
  func.func @transform_8(%arg0: i32) -> (i32, i32) {
    %c0_i32 = arith.constant 0 : i32
    %c0_i32_0 = arith.constant 0 : i32
    return %arg0, %c0_i32 : i32, i32
  }
}

</mosaic_0001>

<llo_original>
// kernel: fwd.1
$region0: #{fwd.1}
  #allocation0 [shape = 'u32[]', space=smem, size = 0x4, offset = 0x4, fixed_abs, tag = 'smem constant byte address 0x4 - core index']
  #allocation1 [shape = 'u32[144,128]{1,0:T(1,128)}', space=vmem, size = 0x12000, scoped, tag = 'internal scratch']
  #allocation2 [shape = 'f32[16,128]{1,0:T(8,128)}', space=vmem, size = 0x2000, scoped, tag = 'scratch operand']
  %s0 = inlined_call_operand.vmem [shape: bf16[32,128], index: 0, kind: input, shape index: {}]
  %s1 = inlined_call_operand.hbm [shape: bf16[4,128,128], index: 1, kind: input, shape index: {}]
  %s2 = inlined_call_operand.vmem [shape: f32[4,1,128], index: 2, kind: input, shape index: {}]
  %s3 = inlined_call_operand.hbm [shape: bf16[4,128,128], index: 3, kind: input, shape index: {}]
  %s4 = inlined_call_operand.vmem [shape: f32[4,1,128], index: 4, kind: input, shape index: {}]
  %s5 = inlined_call_operand.hbm [shape: bf16[128,256], index: 5, kind: input, shape index: {}]
  %s6 = inlined_call_operand.vmem [shape: f32[1,256], index: 6, kind: input, shape index: {}]
  %s7 = inlined_call_operand.vmem [shape: f32[1,128], index: 7, kind: input, shape index: {}]
  %s8 = inlined_call_operand.vmem [shape: f32[32,128], index: 8, kind: output, shape index: {}]
  %s9 = sld [smem:[#allocation0]]
  $region77: #{fwd.1} parent=0
    _
  %s11 = ssub.s32 1, %s9
  %s12 = scalar_select 0, %s11, %s9
  $region1: #{fwd.1} parent=0
    #allocation3 [shape = 'u8[131072]{0}', space=vmem, size = 0x20000, scoped, tag = 'input window, operand 1, single buffered']
    #allocation4 [shape = 's32[2]{0}', space=sflag, size = 0x8, scoped, tag = 'scoped memory for fwd.1']
    #allocation5 [shape = 'u8[131072]{0}', space=vmem, size = 0x20000, scoped, tag = 'input window, operand 3, single buffered']
    #allocation6 [shape = 's32[1]{0}', space=sflag, size = 0x4, scoped, tag = 'scoped memory for fwd.1']
    #allocation7 [shape = 'u8[65536]{0}', space=vmem, size = 0x10000, scoped, tag = 'input window, operand 5, single buffered']
    %13 = vsyncpa [#allocation4], 0
    %14 = vsyncpa [#allocation6], 0
    loop: start=0, step=1, limit=4
    $region2: #{fwd.1} parent=1 // loop_pre_header
      _
    $region3: #{fwd.1} parent=1 // loop_header
      %s16 = sphi 0, %s20
      %p17 = scmp.ge.s32.totalorder %s16, 4
      %s26 = sphi 0, %s28
      %s29 = sphi 0, %s26
      %s30 = sphi 0, %s29
      %s46 = sphi 0, %s30
      %s50 = sphi 0, %s50
      %s52 = sphi 0, %s50
      %s53 = sphi 0, %s52
      %s67 = sphi 0, %s53
      %s71 = sphi 0, %s71
      %s73 = sphi 0, %s71
      %s74 = sphi 0, %s73
      %s88 = sphi 0, %s74
      %s92 = sphi 0, %s92
      %s94 = sphi 0, %s92
      %s95 = sphi 0, %s94
      %s109 = sphi 0, %s95
      %s113 = sphi 0, %s113
      %s115 = sphi 0, %s113
      %s116 = sphi 0, %s115
      %s130 = sphi 0, %s116
      %s134 = sphi 0, %s134
      %s136 = sphi 0, %s134
      %s137 = sphi 0, %s136
      %s151 = sphi 0, %s137
      %s155 = sphi 0, %s155
      %s157 = sphi 0, %s155
      %s158 = sphi 0, %s157
      %s172 = sphi 0, %s158
      %s176 = sphi 0, %s176
      %s178 = sphi 0, %s176
      %s179 = sphi 0, %s178
      %s193 = sphi 0, %s179
      %s199 = sphi 0, %s201
      %s202 = sphi 0, %s199
      %s203 = sphi 0, %s202
      %s219 = sphi 0, %s203
    $region4: #{fwd.1} parent=1 // loop_header_branch
      %19 = sbr.rel (%p17) target = $region8
    $region5: #{fwd.1} parent=1 // loop_body
      %s21 = ssub.s32 %s16, 1
      %s22 = ssub.s32 %s16, 2
      %s23 = sadd.s32 %s16, 1
      %s24 = ssub.s32 %s16, %s23
      %p25 = scmp.eq.s32.totalorder %s24, 0
      %s27 = sadd.s32 %s26, 1
      %s28 = scalar_select %p25, %s26, %s27
      %p31 = pneg %p25
      %p32 = scmp.eq.s32.totalorder %s16, 1
      %p33 = por %p31, %p32
      %p34 = scmp.ne.s32.totalorder %s26, %s29
      %p35 = scmp.eq.s32.totalorder %s16, 0
      %p36 = por %p34, %p35
      %p37 = scmp.ne.s32.totalorder %s26, %s29
      %p38 = scmp.eq.s32.totalorder %s21, 1
      %p39 = por %p37, %p38
      %p40 = scmp.ne.s32.totalorder %s29, %s30
      %p41 = scmp.eq.s32.totalorder %s21, 0
      %p42 = por %p40, %p41
      %p43 = scmp.ne.s32.totalorder %s29, %s30
      %p44 = scmp.eq.s32.totalorder %s22, 1
      %p45 = por %p43, %p44
      %p47 = scmp.ne.s32.totalorder %s30, %s46
      %p48 = scmp.eq.s32.totalorder %s22, 0
      %p49 = por %p47, %p48
      %s51 = sadd.s32 %s50, 1
      %p54 = scmp.eq.s32.totalorder %s16, 1
      %p55 = scmp.ne.s32.totalorder %s50, %s52
      %p56 = scmp.eq.s32.totalorder %s16, 0
      %p57 = por %p55, %p56
      %p58 = scmp.ne.s32.totalorder %s50, %s52
      %p59 = scmp.eq.s32.totalorder %s21, 1
      %p60 = por %p58, %p59
      %p61 = scmp.ne.s32.totalorder %s52, %s53
      %p62 = scmp.eq.s32.totalorder %s21, 0
      %p63 = por %p61, %p62
      %p64 = scmp.ne.s32.totalorder %s52, %s53
      %p65 = scmp.eq.s32.totalorder %s22, 1
      %p66 = por %p64, %p65
      %p68 = scmp.ne.s32.totalorder %s53, %s67
      %p69 = scmp.eq.s32.totalorder %s22, 0
      %p70 = por %p68, %p69
      %s72 = sadd.s32 %s71, 1
      %p75 = scmp.eq.s32.totalorder %s16, 1
      %p76 = scmp.ne.s32.totalorder %s71, %s73
      %p77 = scmp.eq.s32.totalorder %s16, 0
      %p78 = por %p76, %p77
      %p79 = scmp.ne.s32.totalorder %s71, %s73
      %p80 = scmp.eq.s32.totalorder %s21, 1
      %p81 = por %p79, %p80
      %p82 = scmp.ne.s32.totalorder %s73, %s74
      %p83 = scmp.eq.s32.totalorder %s21, 0
      %p84 = por %p82, %p83
      %p85 = scmp.ne.s32.totalorder %s73, %s74
      %p86 = scmp.eq.s32.totalorder %s22, 1
      %p87 = por %p85, %p86
      %p89 = scmp.ne.s32.totalorder %s74, %s88
      %p90 = scmp.eq.s32.totalorder %s22, 0
      %p91 = por %p89, %p90
      %s93 = sadd.s32 %s92, 1
      %p96 = scmp.eq.s32.totalorder %s16, 1
      %p97 = scmp.ne.s32.totalorder %s92, %s94
      %p98 = scmp.eq.s32.totalorder %s16, 0
      %p99 = por %p97, %p98
      %p100 = scmp.ne.s32.totalorder %s92, %s94
      %p101 = scmp.eq.s32.totalorder %s21, 1
      %p102 = por %p100, %p101
      %p103 = scmp.ne.s32.totalorder %s94, %s95
      %p104 = scmp.eq.s32.totalorder %s21, 0
      %p105 = por %p103, %p104
      %p106 = scmp.ne.s32.totalorder %s94, %s95
      %p107 = scmp.eq.s32.totalorder %s22, 1
      %p108 = por %p106, %p107
      %p110 = scmp.ne.s32.totalorder %s95, %s109
      %p111 = scmp.eq.s32.totalorder %s22, 0
      %p112 = por %p110, %p111
      %s114 = sadd.s32 %s113, 1
      %p117 = scmp.eq.s32.totalorder %s16, 1
      %p118 = scmp.ne.s32.totalorder %s113, %s115
      %p119 = scmp.eq.s32.totalorder %s16, 0
      %p120 = por %p118, %p119
      %p121 = scmp.ne.s32.totalorder %s113, %s115
      %p122 = scmp.eq.s32.totalorder %s21, 1
      %p123 = por %p121, %p122
      %p124 = scmp.ne.s32.totalorder %s115, %s116
      %p125 = scmp.eq.s32.totalorder %s21, 0
      %p126 = por %p124, %p125
      %p127 = scmp.ne.s32.totalorder %s115, %s116
      %p128 = scmp.eq.s32.totalorder %s22, 1
      %p129 = por %p127, %p128
      %p131 = scmp.ne.s32.totalorder %s116, %s130
      %p132 = scmp.eq.s32.totalorder %s22, 0
      %p133 = por %p131, %p132
      %s135 = sadd.s32 %s134, 1
      %p138 = scmp.eq.s32.totalorder %s16, 1
      %p139 = scmp.ne.s32.totalorder %s134, %s136
      %p140 = scmp.eq.s32.totalorder %s16, 0
      %p141 = por %p139, %p140
      %p142 = scmp.ne.s32.totalorder %s134, %s136
      %p143 = scmp.eq.s32.totalorder %s21, 1
      %p144 = por %p142, %p143
      %p145 = scmp.ne.s32.totalorder %s136, %s137
      %p146 = scmp.eq.s32.totalorder %s21, 0
      %p147 = por %p145, %p146
      %p148 = scmp.ne.s32.totalorder %s136, %s137
      %p149 = scmp.eq.s32.totalorder %s22, 1
      %p150 = por %p148, %p149
      %p152 = scmp.ne.s32.totalorder %s137, %s151
      %p153 = scmp.eq.s32.totalorder %s22, 0
      %p154 = por %p152, %p153
      %s156 = sadd.s32 %s155, 1
      %p159 = scmp.eq.s32.totalorder %s16, 1
      %p160 = scmp.ne.s32.totalorder %s155, %s157
      %p161 = scmp.eq.s32.totalorder %s16, 0
      %p162 = por %p160, %p161
      %p163 = scmp.ne.s32.totalorder %s155, %s157
      %p164 = scmp.eq.s32.totalorder %s21, 1
      %p165 = por %p163, %p164
      %p166 = scmp.ne.s32.totalorder %s157, %s158
      %p167 = scmp.eq.s32.totalorder %s21, 0
      %p168 = por %p166, %p167
      %p169 = scmp.ne.s32.totalorder %s157, %s158
      %p170 = scmp.eq.s32.totalorder %s22, 1
      %p171 = por %p169, %p170
      %p173 = scmp.ne.s32.totalorder %s158, %s172
      %p174 = scmp.eq.s32.totalorder %s22, 0
      %p175 = por %p173, %p174
      %s177 = sadd.s32 %s176, 1
      %p180 = scmp.eq.s32.totalorder %s16, 1
      %p181 = scmp.ne.s32.totalorder %s176, %s178
      %p182 = scmp.eq.s32.totalorder %s16, 0
      %p183 = por %p181, %p182
      %p184 = scmp.ne.s32.totalorder %s176, %s178
      %p185 = scmp.eq.s32.totalorder %s21, 1
      %p186 = por %p184, %p185
      %p187 = scmp.ne.s32.totalorder %s178, %s179
      %p188 = scmp.eq.s32.totalorder %s21, 0
      %p189 = por %p187, %p188
      %p190 = scmp.ne.s32.totalorder %s178, %s179
      %p191 = scmp.eq.s32.totalorder %s22, 1
      %p192 = por %p190, %p191
      %p194 = scmp.ne.s32.totalorder %s179, %s193
      %p195 = scmp.eq.s32.totalorder %s22, 0
      %p196 = por %p194, %p195
      %s197 = ssub.s32 %s16, %s23
      %p198 = scmp.eq.s32.totalorder %s197, 0
      %s200 = sadd.s32 %s199, 1
      %s201 = scalar_select %p198, %s199, %s200
      %p204 = pneg %p198
      %p205 = scmp.eq.s32.totalorder %s16, 1
      %p206 = por %p204, %p205
      %p207 = scmp.ne.s32.totalorder %s199, %s202
      %p208 = scmp.eq.s32.totalorder %s16, 0
      %p209 = por %p207, %p208
      %p210 = scmp.ne.s32.totalorder %s199, %s202
      %p211 = scmp.eq.s32.totalorder %s21, 1
      %p212 = por %p210, %p211
      %p213 = scmp.ne.s32.totalorder %s202, %s203
      %p214 = scmp.eq.s32.totalorder %s21, 0
      %p215 = por %p213, %p214
      %p216 = scmp.ne.s32.totalorder %s202, %s203
      %p217 = scmp.eq.s32.totalorder %s22, 1
      %p218 = por %p216, %p217
      %p220 = scmp.ne.s32.totalorder %s203, %s219
      %p221 = scmp.eq.s32.totalorder %s22, 0
      %p222 = por %p220, %p221
      %p223 = scmp.le.s32.totalorder 1, %s16
      %p224 = scmp.lt.s32.totalorder %s16, 3
      %p225 = pnand %p223, %p224
      %p226 = pneg %p225
      // Predicated region
      $region9: #{fwd.1} parent=5 // pred_check
        _
      $region10: #{fwd.1} parent=5 // pred_check_branch
        %228 = sbr.rel (%p225) target = $region12
      $region11: #{fwd.1} parent=5 // pred_region
        %s229 = ssub.s32 %s16, 1
        // Predicated region
        $region13: #{fwd.1} parent=11 // pred_check
          %p230 = pneg %p63
        $region14: #{fwd.1} parent=11 // pred_check_branch
          %232 = sbr.rel (%p230) target = $region16
        $region15: #{fwd.1} parent=11 // pred_region
          %s234 = ssub.s32 4096, 4096
          %235 = vsyncadd [#allocation4], %s234
          %s236 = sshll.u32 [#allocation3], 4
          %s237 = int_to_ptr.vmem [resolvable:$true] %s236
          %242 = dma.hbm_to_vmem [thread:$0]  %s1, 4096, %s237, [#allocation4], 64, 64, 4
        $region16: #{fwd.1} parent=11 // pred_fallthru
          _
        // Predicated region
        $region17: #{fwd.1} parent=11 // pred_check
          %p243 = pneg %p84
        $region18: #{fwd.1} parent=11 // pred_check_branch
          %245 = sbr.rel (%p243) target = $region20
        $region19: #{fwd.1} parent=11 // pred_region
          _
        $region20: #{fwd.1} parent=11 // pred_fallthru
          _
        // Predicated region
        $region21: #{fwd.1} parent=11 // pred_check
          %p246 = pneg %p105
        $region22: #{fwd.1} parent=11 // pred_check_branch
          %248 = sbr.rel (%p246) target = $region24
        $region23: #{fwd.1} parent=11 // pred_region
          %s250 = ssub.s32 4096, 4096
          %251 = vsyncadd [#allocation6], %s250
          %s252 = sshll.u32 [#allocation5], 4
          %s253 = int_to_ptr.vmem [resolvable:$true] %s252
          %258 = dma.hbm_to_vmem [thread:$0]  %s3, 4096, %s253, [#allocation6], 64, 64, 4
        $region24: #{fwd.1} parent=11 // pred_fallthru
          _
        // Predicated region
        $region25: #{fwd.1} parent=11 // pred_check
          %p259 = pneg %p126
        $region26: #{fwd.1} parent=11 // pred_check_branch
          %261 = sbr.rel (%p259) target = $region28
        $region27: #{fwd.1} parent=11 // pred_region
          _
        $region28: #{fwd.1} parent=11 // pred_fallthru
          _
        // Predicated region
        $region29: #{fwd.1} parent=11 // pred_check
          %p262 = pneg %p147
        $region30: #{fwd.1} parent=11 // pred_check_branch
          %264 = sbr.rel (%p262) target = $region32
        $region31: #{fwd.1} parent=11 // pred_region
          %s266 = ssub.s32 2048, 2048
          %267 = vsyncadd [#allocation6], %s266
          %s268 = sshll.u32 [#allocation7], 4
          %s269 = int_to_ptr.vmem [resolvable:$true] %s268
          %274 = dma.hbm_to_vmem [thread:$0]  %s5, 2048, %s269, [#allocation6], 128, 128, 8
        $region32: #{fwd.1} parent=11 // pred_fallthru
          _
        // Predicated region
        $region33: #{fwd.1} parent=11 // pred_check
          %p275 = pneg %p168
        $region34: #{fwd.1} parent=11 // pred_check_branch
          %277 = sbr.rel (%p275) target = $region36
        $region35: #{fwd.1} parent=11 // pred_region
          _
        $region36: #{fwd.1} parent=11 // pred_fallthru
          _
        // Predicated region
        $region37: #{fwd.1} parent=11 // pred_check
          %p278 = pneg %p189
        $region38: #{fwd.1} parent=11 // pred_check_branch
          %280 = sbr.rel (%p278) target = $region40
        $region39: #{fwd.1} parent=11 // pred_region
          _
        $region40: #{fwd.1} parent=11 // pred_fallthru
          _
      $region12: #{fwd.1} parent=5 // pred_fallthru
        _
      %p281 = scmp.lt.s32.totalorder %s16, 2
      // Predicated region
      $region41: #{fwd.1} parent=5 // pred_check
        %p282 = pneg %p281
      $region42: #{fwd.1} parent=5 // pred_check_branch
        %284 = sbr.rel (%p282) target = $region44
      $region43: #{fwd.1} parent=5 // pred_region
        // Predicated region
        $region45: #{fwd.1} parent=43 // pred_check
          %p285 = pneg %p36
        $region46: #{fwd.1} parent=43 // pred_check_branch
          %287 = sbr.rel (%p285) target = $region48
        $region47: #{fwd.1} parent=43 // pred_region
          %s288 = smul.u32 2, %s16
          %p289 = scmp.lt.s32.totalorder %s288, 3
          %s290 = scalar_select %p289, %s288, 3
          %s291 = smul.addr %s290, 4
          %s292 = scalar_lea.vmem %s0, %s291
          %s293 = smul.u32 2, %s16
        $region48: #{fwd.1} parent=43 // pred_fallthru
          _
      $region44: #{fwd.1} parent=5 // pred_fallthru
        _
      %p294 = scmp.le.s32.totalorder 1, %s16
      %p295 = scmp.lt.s32.totalorder %s16, 3
      %p296 = pnand %p294, %p295
      %p297 = pneg %p296
      // Predicated region
      $region49: #{fwd.1} parent=5 // pred_check
        _
      $region50: #{fwd.1} parent=5 // pred_check_branch
        %299 = sbr.rel (%p296) target = $region52
      $region51: #{fwd.1} parent=5 // pred_region
        %s300 = ssub.s32 %s16, 1
        // Predicated region
        $region53: #{fwd.1} parent=51 // pred_check
          %p301 = pneg %p63
        $region54: #{fwd.1} parent=51 // pred_check_branch
          %303 = sbr.rel (%p301) target = $region56
        $region55: #{fwd.1} parent=51 // pred_region
          %304 = dma.done [#allocation4], 4096
        $region56: #{fwd.1} parent=51 // pred_fallthru
          _
        // Predicated region
        $region57: #{fwd.1} parent=51 // pred_check
          %p305 = pneg %p105
        $region58: #{fwd.1} parent=51 // pred_check_branch
          %307 = sbr.rel (%p305) target = $region60
        $region59: #{fwd.1} parent=51 // pred_region
          %308 = dma.done [#allocation6], 4096
        $region60: #{fwd.1} parent=51 // pred_fallthru
          _
        // Predicated region
        $region61: #{fwd.1} parent=51 // pred_check
          %p309 = pneg %p147
        $region62: #{fwd.1} parent=51 // pred_check_branch
          %311 = sbr.rel (%p309) target = $region64
        $region63: #{fwd.1} parent=51 // pred_region
          %312 = dma.done [#allocation6], 2048
        $region64: #{fwd.1} parent=51 // pred_fallthru
          _
        %s313 = smul.u32 2, %s21
        %p314 = scmp.lt.s32.totalorder %s313, 3
        %s315 = scalar_select %p314, %s313, 3
        %s316 = smul.addr %s315, 4
        %s317 = scalar_lea.vmem %s0, %s316
        %p318 = pneg %p42
        %p319 = pneg %p39
        %p320 = pneg %p63
        %p321 = pneg %p60
        %p322 = pneg %p84
        %p323 = pneg %p81
        %p324 = pneg %p105
        %p325 = pneg %p102
        %p326 = pneg %p126
        %p327 = pneg %p123
        %p328 = pneg %p147
        %p329 = pneg %p144
        %p330 = pneg %p168
        %p331 = pneg %p165
        %p332 = pneg %p189
        %p333 = pneg %p186
        %p334 = pneg %p215
        %p335 = pneg %p212
        %s336 = smul.u32 2, %s21
        %p337 = scmp.lt.s32.totalorder %s336, 3
        %s338 = scalar_select %p337, %s336, 3
        %s339 = smul.addr %s338, 8
        %s340 = scalar_lea.vmem %s8, %s339
        %s341 = smul.u32 2, %s21
        %p342 = scmp.lt.s32.totalorder %s341, 3
        %s343 = scalar_select %p342, %s341, 3
        %s344 = smul.addr %s343, 4
        %s345 = scalar_lea.vmem %s0, %s344
        %s346 = smul.u32 2, %s21
        %s347 = smul.u32 2, %s21
        %p348 = scmp.lt.s32.totalorder %s347, 3
        %s349 = scalar_select %p348, %s347, 3
        %s350 = smul.addr %s349, 8
        %s351 = scalar_lea.vmem %s8, %s350
        %s352 = smul.u32 2, %s21
        %v354 = vld [vmem:[%s345] sm:$0xf]
        %v355 = vld [vmem:[%s345 + $0x4] sm:$0xf]
        %v356 = vld [vmem:[#allocation7] sm:$0xff]
        %v357 = vld [vmem:[#allocation7 + $0x8] sm:$0xff]
        %v358 = vld [vmem:[#allocation7 + $0x10] sm:$0xff]
        %v359 = vld [vmem:[#allocation7 + $0x18] sm:$0xff]
        %v360 = vld [vmem:[#allocation7 + $0x20] sm:$0xff]
        %v361 = vld [vmem:[#allocation7 + $0x28] sm:$0xff]
        %v362 = vld [vmem:[#allocation7 + $0x30] sm:$0xff]
        %v363 = vld [vmem:[#allocation7 + $0x38] sm:$0xff]
        %v364 = vld [vmem:[#allocation7 + $0x40] sm:$0xff]
        %v365 = vld [vmem:[#allocation7 + $0x48] sm:$0xff]
        %v366 = vld [vmem:[#allocation7 + $0x50] sm:$0xff]
        %v367 = vld [vmem:[#allocation7 + $0x58] sm:$0xff]
        %v368 = vld [vmem:[#allocation7 + $0x60] sm:$0xff]
        %v369 = vld [vmem:[#allocation7 + $0x68] sm:$0xff]
        %v370 = vld [vmem:[#allocation7 + $0x70] sm:$0xff]
        %v371 = vld [vmem:[#allocation7 + $0x78] sm:$0xff]
        %v372 = vld [vmem:[%s6] sm:$0x3]
        %v374 = vlaneseq
        %v375 = vshrl.u32 %v374, 7
        %v376 = vsub.s32 0, %v375
        %v377 = vrot.slane %v372, %v376
        %v378 = vlaneseq
        %v379 = vshrl.u32 %v378, 7
        %v380 = vsub.s32 1, %v379
        %v381 = vrot.slane %v372, %v380
        %v386 = vunpack.c.l.b16 %v354
        %v387 = vunpack.c.l.b16 %v355
        %v388 = vpack.c.b16 %v387, %v386
        %v406 = vunpack.c.l.b16 %v356
        %v407 = vunpack.c.h.b16 %v356
        %v408 = vunpack.c.l.b16 %v357
        %v409 = vunpack.c.h.b16 %v357
        %v410 = vunpack.c.l.b16 %v358
        %v411 = vunpack.c.h.b16 %v358
        %v412 = vunpack.c.l.b16 %v359
        %v413 = vunpack.c.h.b16 %v359
        %v414 = vunpack.c.l.b16 %v360
        %v415 = vunpack.c.h.b16 %v360
        %v416 = vunpack.c.l.b16 %v361
        %v417 = vunpack.c.h.b16 %v361
        %v418 = vunpack.c.l.b16 %v362
        %v419 = vunpack.c.h.b16 %v362
        %v420 = vunpack.c.l.b16 %v363
        %v421 = vunpack.c.h.b16 %v363
        %v422 = vunpack.c.l.b16 %v364
        %v423 = vunpack.c.h.b16 %v364
        %v424 = vunpack.c.l.b16 %v365
        %v425 = vunpack.c.h.b16 %v365
        %v426 = vunpack.c.l.b16 %v366
        %v427 = vunpack.c.h.b16 %v366
        %v428 = vunpack.c.l.b16 %v367
        %v429 = vunpack.c.h.b16 %v367
        %v430 = vunpack.c.l.b16 %v368
        %v431 = vunpack.c.h.b16 %v368
        %v432 = vunpack.c.l.b16 %v369
        %v433 = vunpack.c.h.b16 %v369
        %v434 = vunpack.c.l.b16 %v370
        %v435 = vunpack.c.h.b16 %v370
        %v436 = vunpack.c.l.b16 %v371
        %v437 = vunpack.c.h.b16 %v371
        %v438 = vpack.c.b16 %v408, %v406
        %v439 = vpack.c.b16 %v409, %v407
        %v440 = vpack.c.b16 %v412, %v410
        %v441 = vpack.c.b16 %v413, %v411
        %v442 = vpack.c.b16 %v416, %v414
        %v443 = vpack.c.b16 %v417, %v415
        %v444 = vpack.c.b16 %v420, %v418
        %v445 = vpack.c.b16 %v421, %v419
        %v446 = vpack.c.b16 %v424, %v422
        %v447 = vpack.c.b16 %v425, %v423
        %v448 = vpack.c.b16 %v428, %v426
        %v449 = vpack.c.b16 %v429, %v427
        %v450 = vpack.c.b16 %v432, %v430
        %v451 = vpack.c.b16 %v433, %v431
        %v452 = vpack.c.b16 %v436, %v434
        %v453 = vpack.c.b16 %v437, %v435
        %470 = vmatprep.subr.bf16.mxu0 %v453
        %471 = vmatpush1.bf16.msra.mxu0 %v452
        %472 = vmatprep.subr.bf16.mxu0 %v451
        %473 = vmatpush1.bf16.msra.mxu0 %v450
        %474 = vmatprep.subr.bf16.mxu0 %v449
        %475 = vmatpush1.bf16.msra.mxu0 %v448
        %476 = vmatprep.subr.bf16.mxu0 %v447
        %477 = vmatpush1.bf16.msra.mxu0 %v446
        %478 = vmatprep.subr.bf16.mxu0 %v445
        %479 = vmatpush1.bf16.msra.mxu0 %v444
        %480 = vmatprep.subr.bf16.mxu0 %v443
        %481 = vmatpush1.bf16.msra.mxu0 %v442
        %482 = vmatprep.subr.bf16.mxu0 %v441
        %483 = vmatpush1.bf16.msra.mxu0 %v440
        %484 = vmatprep.subr.bf16.mxu0 %v439
        %485 = vmatpush1.bf16.msra.mxu0 %v438
        %486 = vmatprep.subr.bf16.mxu0 0
        %487 = vmatpush2.bf16.msra.mxu0 0
        %488 = vmatprep.subr.bf16.mxu0 0
        %489 = vmatpush2.bf16.msra.mxu0 0
        %490 = vmatprep.subr.bf16.mxu0 0
        %491 = vmatpush2.bf16.msra.mxu0 0
        %492 = vmatprep.subr.bf16.mxu0 0
        %493 = vmatpush2.bf16.msra.mxu0 0
        %494 = vmatprep.subr.bf16.mxu0 0
        %495 = vmatpush2.bf16.msra.mxu0 0
        %496 = vmatprep.subr.bf16.mxu0 0
        %497 = vmatpush2.bf16.msra.mxu0 0
        %498 = vmatprep.subr.bf16.mxu0 0
        %499 = vmatpush2.bf16.msra.mxu0 0
        %500 = vmatprep.subr.bf16.mxu0 0
        %501 = vmatpush2.bf16.msra.mxu0 0
        %502 = vmatprep.mubr.bf16.mxu0 0
        %503 = vmatmul.mubr.bf16.gmra.mxu0 %v388
        %v504 = vpop.f32.mrf.mxu0
        %v505 = vadd.f32 %v377, %v504
        %v506 = vpop.f32.mrf.mxu0
        %v507 = vadd.f32 %v381, %v506
        %v508 = vpop.f32.mrf.mxu0
        %v509 = vadd.f32 %v377, %v508
        %v510 = vpop.f32.mrf.mxu0
        %v511 = vadd.f32 %v381, %v510
        %512 = vdwg.mxu0
        %v513 = vlaneseq
        %v514 = vand.u32 %v513, 127
        %vm515 = vcmp.lt.s32.totalorder %v514, 4
        %v516 = vsel %vm515, %v505, -inf
        %v517 = vsel %vm515, %v509, -inf
        %518 = vmax.xlane.f32.xlu0 %v516
        %v519 = vpop.xlane.xlu0 %518
        %520 = vmax.xlane.f32.xlu0 %v517
        %v521 = vpop.xlane.xlu0 %520
        %v522 = vsub.f32 %v516, %v519
        %v523 = vsub.f32 %v517, %v521
        %v524 = vmul.f32 %v522, 1.442695
        %v525 = vpow.pop %v524
        %v526 = vmul.f32 %v523, 1.442695
        %v527 = vpow.pop %v526
        %v528 = vsel %vm515, %v525, 0.0
        %v529 = vsel %vm515, %v527, 0.0
        %530 = vadd.xlane.f32.xlu0 %v528
        %v531 = vpop.xlane.xlu0 %530
        %532 = vadd.xlane.f32.xlu0 %v529
        %v533 = vpop.xlane.xlu0 %532
        %v534 = vrcp.pop %v531
        %v535 = vrcp.pop %v533
        %v536 = vmul.f32 %v528, %v534
        %v537 = vmul.f32 %v529, %v535
        %v538 = vsel %vm515, %v507, -inf
        %v539 = vsel %vm515, %v511, -inf
        %540 = vmax.xlane.f32.xlu0 %v538
        %v541 = vpop.xlane.xlu0 %540
        %542 = vmax.xlane.f32.xlu0 %v539
        %v543 = vpop.xlane.xlu0 %542
        %v544 = vsub.f32 %v538, %v541
        %v545 = vsub.f32 %v539, %v543
        %v546 = vmul.f32 %v544, 1.442695
        %v547 = vpow.pop %v546
        %v548 = vmul.f32 %v545, 1.442695
        %v549 = vpow.pop %v548
        %v550 = vsel %vm515, %v547, 0.0
        %v551 = vsel %vm515, %v549, 0.0
        %552 = vadd.xlane.f32.xlu0 %v550
        %v553 = vpop.xlane.xlu0 %552
        %554 = vadd.xlane.f32.xlu0 %v551
        %v555 = vpop.xlane.xlu0 %554
        %v556 = vrcp.pop %v553
        %v557 = vrcp.pop %v555
        %v558 = vmul.f32 %v550, %v556
        %v559 = vmul.f32 %v551, %v557
        %vm560 = vcmp.lt.s32.totalorder %v514, 8
        %561 = vst [vmem:[#allocation2] sm:$0xff] 0.0
        %562 = vst [vmem:[#allocation2 + $0x8] sm:$0xff] 0.0
        %v563 = vld [vmem:[#allocation3] sm:$0xf]
        %v564 = vld [vmem:[#allocation3 + $0x4] sm:$0xf]
        %v565 = vld [vmem:[#allocation3 + $0x8] sm:$0xf]
        %v566 = vld [vmem:[#allocation3 + $0xc] sm:$0xf]
        %v567 = vld [vmem:[#allocation3 + $0x10] sm:$0xf]
        %v568 = vld [vmem:[#allocation3 + $0x14] sm:$0xf]
        %v569 = vld [vmem:[#allocation3 + $0x18] sm:$0xf]
        %v570 = vld [vmem:[#allocation3 + $0x1c] sm:$0xf]
        %v571 = vld [vmem:[#allocation3 + $0x20] sm:$0xf]
        %v572 = vld [vmem:[#allocation3 + $0x24] sm:$0xf]
        %v573 = vld [vmem:[#allocation3 + $0x28] sm:$0xf]
        %v574 = vld [vmem:[#allocation3 + $0x2c] sm:$0xf]
        %v575 = vld [vmem:[#allocation3 + $0x30] sm:$0xf]
        %v576 = vld [vmem:[#allocation3 + $0x34] sm:$0xf]
        %v577 = vld [vmem:[#allocation3 + $0x38] sm:$0xf]
        %v578 = vld [vmem:[#allocation3 + $0x3c] sm:$0xf]
        %v579 = vld [vmem:[%s2] sm:$0x1]
        %v581 = vlaneseq
        %v582 = vshrl.u32 %v581, 7
        %v583 = vsub.s32 0, %v582
        %v584 = vrot.slane %v579, %v583
        %v602 = vunpack.c.l.b16 %v563
        %v603 = vunpack.c.l.b16 %v564
        %v604 = vunpack.c.l.b16 %v565
        %v605 = vunpack.c.l.b16 %v566
        %v606 = vunpack.c.l.b16 %v567
        %v607 = vunpack.c.l.b16 %v568
        %v608 = vunpack.c.l.b16 %v569
        %v609 = vunpack.c.l.b16 %v570
        %v610 = vunpack.c.l.b16 %v571
        %v611 = vunpack.c.l.b16 %v572
        %v612 = vunpack.c.l.b16 %v573
        %v613 = vunpack.c.l.b16 %v574
        %v614 = vunpack.c.l.b16 %v575
        %v615 = vunpack.c.l.b16 %v576
        %v616 = vunpack.c.l.b16 %v577
        %v617 = vunpack.c.l.b16 %v578
        %v618 = vpack.c.b16 %v603, %v602
        %v619 = vpack.c.b16 %v605, %v604
        %v620 = vpack.c.b16 %v607, %v606
        %v621 = vpack.c.b16 %v609, %v608
        %v622 = vpack.c.b16 %v611, %v610
        %v623 = vpack.c.b16 %v613, %v612
        %v624 = vpack.c.b16 %v615, %v614
        %v625 = vpack.c.b16 %v617, %v616
        %634 = vmatprep.subr.bf16.mxu0 0
        %635 = vmatpush1.bf16.msra.mxu0 %v625
        %636 = vmatprep.subr.bf16.mxu0 0
        %637 = vmatpush1.bf16.msra.mxu0 %v624
        %638 = vmatprep.subr.bf16.mxu0 0
        %639 = vmatpush1.bf16.msra.mxu0 %v623
        %640 = vmatprep.subr.bf16.mxu0 0
        %641 = vmatpush1.bf16.msra.mxu0 %v622
        %642 = vmatprep.subr.bf16.mxu0 0
        %643 = vmatpush1.bf16.msra.mxu0 %v621
        %644 = vmatprep.subr.bf16.mxu0 0
        %645 = vmatpush1.bf16.msra.mxu0 %v620
        %646 = vmatprep.subr.bf16.mxu0 0
        %647 = vmatpush1.bf16.msra.mxu0 %v619
        %648 = vmatprep.subr.bf16.mxu0 0
        %649 = vmatpush1.bf16.msra.mxu0 %v618
        %650 = vmatprep.subr.bf16.mxu0 0
        %651 = vmatpush2.bf16.msra.mxu0 0
        %652 = vmatprep.subr.bf16.mxu0 0
        %653 = vmatpush2.bf16.msra.mxu0 0
        %654 = vmatprep.subr.bf16.mxu0 0
        %655 = vmatpush2.bf16.msra.mxu0 0
        %656 = vmatprep.subr.bf16.mxu0 0
        %657 = vmatpush2.bf16.msra.mxu0 0
        %658 = vmatprep.subr.bf16.mxu0 0
        %659 = vmatpush2.bf16.msra.mxu0 0
        %660 = vmatprep.subr.bf16.mxu0 0
        %661 = vmatpush2.bf16.msra.mxu0 0
        %662 = vmatprep.subr.bf16.mxu0 0
        %663 = vmatpush2.bf16.msra.mxu0 0
        %664 = vmatprep.subr.bf16.mxu0 0
        %665 = vmatpush2.bf16.msra.mxu0 0
        %666 = vmatprep.mubr.bf16.mxu0 0
        %667 = vmatmul.mubr.bf16.gmra.mxu0 %v388
        %v668 = vpop.f32.mrf.mxu0
        %v669 = vadd.f32 %v584, %v668
        %v670 = vpop.f32.mrf.mxu0
        %v671 = vpop.f32.mrf.mxu0
        %v672 = vadd.f32 %v584, %v671
        %v673 = vpop.f32.mrf.mxu0
        %674 = vdwg.mxu0
        %v675 = vmax.f32 %v669, 0.0
        %v676 = vmax.f32 %v672, 0.0
        %v677 = vpack.c.bf16 %v676, %v675
        %v678 = vld [vmem:[#allocation5] sm:$0xf]
        %v679 = vld [vmem:[#allocation5 + $0x4] sm:$0xf]
        %v680 = vld [vmem:[#allocation5 + $0x8] sm:$0xf]
        %v681 = vld [vmem:[#allocation5 + $0xc] sm:$0xf]
        %v682 = vld [vmem:[#allocation5 + $0x10] sm:$0xf]
        %v683 = vld [vmem:[#allocation5 + $0x14] sm:$0xf]
        %v684 = vld [vmem:[#allocation5 + $0x18] sm:$0xf]
        %v685 = vld [vmem:[#allocation5 + $0x1c] sm:$0xf]
        %v686 = vld [vmem:[#allocation5 + $0x20] sm:$0xf]
        %v687 = vld [vmem:[#allocation5 + $0x24] sm:$0xf]
        %v688 = vld [vmem:[#allocation5 + $0x28] sm:$0xf]
        %v689 = vld [vmem:[#allocation5 + $0x2c] sm:$0xf]
        %v690 = vld [vmem:[#allocation5 + $0x30] sm:$0xf]
        %v691 = vld [vmem:[#allocation5 + $0x34] sm:$0xf]
        %v692 = vld [vmem:[#allocation5 + $0x38] sm:$0xf]
        %v693 = vld [vmem:[#allocation5 + $0x3c] sm:$0xf]
        %v694 = vld [vmem:[%s4] sm:$0x1]
        %v696 = vlaneseq
        %v697 = vshrl.u32 %v696, 7
        %v698 = vsub.s32 0, %v697
        %v699 = vrot.slane %v694, %v698
        %v717 = vunpack.c.l.b16 %v678
        %v718 = vunpack.c.l.b16 %v679
        %v719 = vunpack.c.l.b16 %v680
        %v720 = vunpack.c.l.b16 %v681
        %v721 = vunpack.c.l.b16 %v682
        %v722 = vunpack.c.l.b16 %v683
        %v723 = vunpack.c.l.b16 %v684
        %v724 = vunpack.c.l.b16 %v685
        %v725 = vunpack.c.l.b16 %v686
        %v726 = vunpack.c.l.b16 %v687
        %v727 = vunpack.c.l.b16 %v688
        %v728 = vunpack.c.l.b16 %v689
        %v729 = vunpack.c.l.b16 %v690
        %v730 = vunpack.c.l.b16 %v691
        %v731 = vunpack.c.l.b16 %v692
        %v732 = vunpack.c.l.b16 %v693
        %v733 = vpack.c.b16 %v718, %v717
        %v734 = vpack.c.b16 %v720, %v719
        %v735 = vpack.c.b16 %v722, %v721
        %v736 = vpack.c.b16 %v724, %v723
        %v737 = vpack.c.b16 %v726, %v725
        %v738 = vpack.c.b16 %v728, %v727
        %v739 = vpack.c.b16 %v730, %v729
        %v740 = vpack.c.b16 %v732, %v731
        %749 = vmatprep.subr.bf16.mxu0 0
        %750 = vmatpush1.bf16.msra.mxu0 %v740
        %751 = vmatprep.subr.bf16.mxu0 0
        %752 = vmatpush1.bf16.msra.mxu0 %v739
        %753 = vmatprep.subr.bf16.mxu0 0
        %754 = vmatpush1.bf16.msra.mxu0 %v738
        %755 = vmatprep.subr.bf16.mxu0 0
        %756 = vmatpush1.bf16.msra.mxu0 %v737
        %757 = vmatprep.subr.bf16.mxu0 0
        %758 = vmatpush1.bf16.msra.mxu0 %v736
        %759 = vmatprep.subr.bf16.mxu0 0
        %760 = vmatpush1.bf16.msra.mxu0 %v735
        %761 = vmatprep.subr.bf16.mxu0 0
        %762 = vmatpush1.bf16.msra.mxu0 %v734
        %763 = vmatprep.subr.bf16.mxu0 0
        %764 = vmatpush1.bf16.msra.mxu0 %v733
        %765 = vmatprep.subr.bf16.mxu0 0
        %766 = vmatpush2.bf16.msra.mxu0 0
        %767 = vmatprep.subr.bf16.mxu0 0
        %768 = vmatpush2.bf16.msra.mxu0 0
        %769 = vmatprep.subr.bf16.mxu0 0
        %770 = vmatpush2.bf16.msra.mxu0 0
        %771 = vmatprep.subr.bf16.mxu0 0
        %772 = vmatpush2.bf16.msra.mxu0 0
        %773 = vmatprep.subr.bf16.mxu0 0
        %774 = vmatpush2.bf16.msra.mxu0 0
        %775 = vmatprep.subr.bf16.mxu0 0
        %776 = vmatpush2.bf16.msra.mxu0 0
        %777 = vmatprep.subr.bf16.mxu0 0
        %778 = vmatpush2.bf16.msra.mxu0 0
        %779 = vmatprep.subr.bf16.mxu0 0
        %780 = vmatpush2.bf16.msra.mxu0 0
        %781 = vmatprep.mubr.bf16.mxu0 0
        %782 = vmatmul.mubr.bf16.gmra.mxu0 %v677
        %v783 = vpop.f32.mrf.mxu0
        %v784 = vadd.f32 %v699, %v783
        %v785 = vpop.f32.mrf.mxu0
        %v786 = vpop.f32.mrf.mxu0
        %v787 = vadd.f32 %v699, %v786
        %v788 = vpop.f32.mrf.mxu0
        %789 = vdwg.mxu0
        %v790 = vsel %vm560, 1, 0
        %vm791 = vcmp.eq.s32.totalorder %v790, 1
        %793 = vset.pattern.permute.xlu0 0
        %794 = vperm.xlu0 %793, %v536
        %v795 = vpop.permute.xlu0 %794
        %798 = vset.pattern.permute.xlu0 0
        %799 = vperm.xlu0 %798, %v537
        %v800 = vpop.permute.xlu0 %799
        %803 = vset.pattern.permute.xlu0 0
        %804 = vperm.xlu0 %803, %v558
        %v805 = vpop.permute.xlu0 %804
        %808 = vset.pattern.permute.xlu0 0
        %809 = vperm.xlu0 %808, %v559
        %v810 = vpop.permute.xlu0 %809
        %v812 = vsel %vm791, %v795, %v805
        %v813 = vsel %vm791, %v800, %v810
        %v814 = vld [vmem:[#allocation2] sm:$0xff]
        %v815 = vld [vmem:[#allocation2 + $0x8] sm:$0xff]
        %v816 = vmul.f32 %v812, %v784
        %v817 = vmul.f32 %v813, %v787
        %v818 = vadd.f32 %v814, %v816
        %v819 = vadd.f32 %v815, %v817
        %820 = vst [vmem:[#allocation2] sm:$0xff] %v818
        %821 = vst [vmem:[#allocation2 + $0x8] sm:$0xff] %v819
        %s822 = scalar_lea.vmem [#allocation3], 64
        %v823 = vld [vmem:[%s822] sm:$0xf]
        %v824 = vld [vmem:[%s822 + $0x4] sm:$0xf]
        %v825 = vld [vmem:[%s822 + $0x8] sm:$0xf]
        %v826 = vld [vmem:[%s822 + $0xc] sm:$0xf]
        %v827 = vld [vmem:[%s822 + $0x10] sm:$0xf]
        %v828 = vld [vmem:[%s822 + $0x14] sm:$0xf]
        %v829 = vld [vmem:[%s822 + $0x18] sm:$0xf]
        %v830 = vld [vmem:[%s822 + $0x1c] sm:$0xf]
        %v831 = vld [vmem:[%s822 + $0x20] sm:$0xf]
        %v832 = vld [vmem:[%s822 + $0x24] sm:$0xf]
        %v833 = vld [vmem:[%s822 + $0x28] sm:$0xf]
        %v834 = vld [vmem:[%s822 + $0x2c] sm:$0xf]
        %v835 = vld [vmem:[%s822 + $0x30] sm:$0xf]
        %v836 = vld [vmem:[%s822 + $0x34] sm:$0xf]
        %v837 = vld [vmem:[%s822 + $0x38] sm:$0xf]
        %v838 = vld [vmem:[%s822 + $0x3c] sm:$0xf]
        %s839 = scalar_lea.vmem %s2, 1
        %v840 = vld [vmem:[%s839] sm:$0x1]
        %v842 = vlaneseq
        %v843 = vshrl.u32 %v842, 7
        %v844 = vsub.s32 0, %v843
        %v845 = vrot.slane %v840, %v844
        %v863 = vunpack.c.l.b16 %v823
        %v864 = vunpack.c.l.b16 %v824
        %v865 = vunpack.c.l.b16 %v825
        %v866 = vunpack.c.l.b16 %v826
        %v867 = vunpack.c.l.b16 %v827
        %v868 = vunpack.c.l.b16 %v828
        %v869 = vunpack.c.l.b16 %v829
        %v870 = vunpack.c.l.b16 %v830
        %v871 = vunpack.c.l.b16 %v831
        %v872 = vunpack.c.l.b16 %v832
        %v873 = vunpack.c.l.b16 %v833
        %v874 = vunpack.c.l.b16 %v834
        %v875 = vunpack.c.l.b16 %v835
        %v876 = vunpack.c.l.b16 %v836
        %v877 = vunpack.c.l.b16 %v837
        %v878 = vunpack.c.l.b16 %v838
        %v879 = vpack.c.b16 %v864, %v863
        %v880 = vpack.c.b16 %v866, %v865
        %v881 = vpack.c.b16 %v868, %v867
        %v882 = vpack.c.b16 %v870, %v869
        %v883 = vpack.c.b16 %v872, %v871
        %v884 = vpack.c.b16 %v874, %v873
        %v885 = vpack.c.b16 %v876, %v875
        %v886 = vpack.c.b16 %v878, %v877
        %895 = vmatprep.subr.bf16.mxu0 0
        %896 = vmatpush1.bf16.msra.mxu0 %v886
        %897 = vmatprep.subr.bf16.mxu0 0
        %898 = vmatpush1.bf16.msra.mxu0 %v885
        %899 = vmatprep.subr.bf16.mxu0 0
        %900 = vmatpush1.bf16.msra.mxu0 %v884
        %901 = vmatprep.subr.bf16.mxu0 0
        %902 = vmatpush1.bf16.msra.mxu0 %v883
        %903 = vmatprep.subr.bf16.mxu0 0
        %904 = vmatpush1.bf16.msra.mxu0 %v882
        %905 = vmatprep.subr.bf16.mxu0 0
        %906 = vmatpush1.bf16.msra.mxu0 %v881
        %907 = vmatprep.subr.bf16.mxu0 0
        %908 = vmatpush1.bf16.msra.mxu0 %v880
        %909 = vmatprep.subr.bf16.mxu0 0
        %910 = vmatpush1.bf16.msra.mxu0 %v879
        %911 = vmatprep.subr.bf16.mxu0 0
        %912 = vmatpush2.bf16.msra.mxu0 0
        %913 = vmatprep.subr.bf16.mxu0 0
        %914 = vmatpush2.bf16.msra.mxu0 0
        %915 = vmatprep.subr.bf16.mxu0 0
        %916 = vmatpush2.bf16.msra.mxu0 0
        %917 = vmatprep.subr.bf16.mxu0 0
        %918 = vmatpush2.bf16.msra.mxu0 0
        %919 = vmatprep.subr.bf16.mxu0 0
        %920 = vmatpush2.bf16.msra.mxu0 0
        %921 = vmatprep.subr.bf16.mxu0 0
        %922 = vmatpush2.bf16.msra.mxu0 0
        %923 = vmatprep.subr.bf16.mxu0 0
        %924 = vmatpush2.bf16.msra.mxu0 0
        %925 = vmatprep.subr.bf16.mxu0 0
        %926 = vmatpush2.bf16.msra.mxu0 0
        %927 = vmatprep.mubr.bf16.mxu0 0
        %928 = vmatmul.mubr.bf16.gmra.mxu0 %v388
        %v929 = vpop.f32.mrf.mxu0
        %v930 = vadd.f32 %v845, %v929
        %v931 = vpop.f32.mrf.mxu0
        %v932 = vpop.f32.mrf.mxu0
        %v933 = vadd.f32 %v845, %v932
        %v934 = vpop.f32.mrf.mxu0
        %935 = vdwg.mxu0
        %v936 = vmax.f32 %v930, 0.0
        %v937 = vmax.f32 %v933, 0.0
        %v938 = vpack.c.bf16 %v937, %v936
        %s939 = scalar_lea.vmem [#allocation5], 64
        %v940 = vld [vmem:[%s939] sm:$0xf]
        %v941 = vld [vmem:[%s939 + $0x4] sm:$0xf]
        %v942 = vld [vmem:[%s939 + $0x8] sm:$0xf]
        %v943 = vld [vmem:[%s939 + $0xc] sm:$0xf]
        %v944 = vld [vmem:[%s939 + $0x10] sm:$0xf]
        %v945 = vld [vmem:[%s939 + $0x14] sm:$0xf]
        %v946 = vld [vmem:[%s939 + $0x18] sm:$0xf]
        %v947 = vld [vmem:[%s939 + $0x1c] sm:$0xf]
        %v948 = vld [vmem:[%s939 + $0x20] sm:$0xf]
        %v949 = vld [vmem:[%s939 + $0x24] sm:$0xf]
        %v950 = vld [vmem:[%s939 + $0x28] sm:$0xf]
        %v951 = vld [vmem:[%s939 + $0x2c] sm:$0xf]
        %v952 = vld [vmem:[%s939 + $0x30] sm:$0xf]
        %v953 = vld [vmem:[%s939 + $0x34] sm:$0xf]
        %v954 = vld [vmem:[%s939 + $0x38] sm:$0xf]
        %v955 = vld [vmem:[%s939 + $0x3c] sm:$0xf]
        %s956 = scalar_lea.vmem %s4, 1
        %v957 = vld [vmem:[%s956] sm:$0x1]
        %v959 = vlaneseq
        %v960 = vshrl.u32 %v959, 7
        %v961 = vsub.s32 0, %v960
        %v962 = vrot.slane %v957, %v961
        %v980 = vunpack.c.l.b16 %v940
        %v981 = vunpack.c.l.b16 %v941
        %v982 = vunpack.c.l.b16 %v942
        %v983 = vunpack.c.l.b16 %v943
        %v984 = vunpack.c.l.b16 %v944
        %v985 = vunpack.c.l.b16 %v945
        %v986 = vunpack.c.l.b16 %v946
        %v987 = vunpack.c.l.b16 %v947
        %v988 = vunpack.c.l.b16 %v948
        %v989 = vunpack.c.l.b16 %v949
        %v990 = vunpack.c.l.b16 %v950
        %v991 = vunpack.c.l.b16 %v951
        %v992 = vunpack.c.l.b16 %v952
        %v993 = vunpack.c.l.b16 %v953
        %v994 = vunpack.c.l.b16 %v954
        %v995 = vunpack.c.l.b16 %v955
        %v996 = vpack.c.b16 %v981, %v980
        %v997 = vpack.c.b16 %v983, %v982
        %v998 = vpack.c.b16 %v985, %v984
        %v999 = vpack.c.b16 %v987, %v986
        %v1000 = vpack.c.b16 %v989, %v988
        %v1001 = vpack.c.b16 %v991, %v990
        %v1002 = vpack.c.b16 %v993, %v992
        %v1003 = vpack.c.b16 %v995, %v994
        %1012 = vmatprep.subr.bf16.mxu0 0
        %1013 = vmatpush1.bf16.msra.mxu0 %v1003
        %1014 = vmatprep.subr.bf16.mxu0 0
        %1015 = vmatpush1.bf16.msra.mxu0 %v1002
        %1016 = vmatprep.subr.bf16.mxu0 0
        %1017 = vmatpush1.bf16.msra.mxu0 %v1001
        %1018 = vmatprep.subr.bf16.mxu0 0
        %1019 = vmatpush1.bf16.msra.mxu0 %v1000
        %1020 = vmatprep.subr.bf16.mxu0 0
        %1021 = vmatpush1.bf16.msra.mxu0 %v999
        %1022 = vmatprep.subr.bf16.mxu0 0
        %1023 = vmatpush1.bf16.msra.mxu0 %v998
        %1024 = vmatprep.subr.bf16.mxu0 0
        %1025 = vmatpush1.bf16.msra.mxu0 %v997
        %1026 = vmatprep.subr.bf16.mxu0 0
        %1027 = vmatpush1.bf16.msra.mxu0 %v996
        %1028 = vmatprep.subr.bf16.mxu0 0
        %1029 = vmatpush2.bf16.msra.mxu0 0
        %1030 = vmatprep.subr.bf16.mxu0 0
        %1031 = vmatpush2.bf16.msra.mxu0 0
        %1032 = vmatprep.subr.bf16.mxu0 0
        %1033 = vmatpush2.bf16.msra.mxu0 0
        %1034 = vmatprep.subr.bf16.mxu0 0
        %1035 = vmatpush2.bf16.msra.mxu0 0
        %1036 = vmatprep.subr.bf16.mxu0 0
        %1037 = vmatpush2.bf16.msra.mxu0 0
        %1038 = vmatprep.subr.bf16.mxu0 0
        %1039 = vmatpush2.bf16.msra.mxu0 0
        %1040 = vmatprep.subr.bf16.mxu0 0
        %1041 = vmatpush2.bf16.msra.mxu0 0
        %1042 = vmatprep.subr.bf16.mxu0 0
        %1043 = vmatpush2.bf16.msra.mxu0 0
        %1044 = vmatprep.mubr.bf16.mxu0 0
        %1045 = vmatmul.mubr.bf16.gmra.mxu0 %v938
        %v1046 = vpop.f32.mrf.mxu0
        %v1047 = vadd.f32 %v962, %v1046
        %v1048 = vpop.f32.mrf.mxu0
        %v1049 = vpop.f32.mrf.mxu0
        %v1050 = vadd.f32 %v962, %v1049
        %v1051 = vpop.f32.mrf.mxu0
        %1052 = vdwg.mxu0
        %1053 = vset.pattern.permute.xlu0 1
        %1054 = vperm.xlu0 %1053, %v536
        %v1055 = vpop.permute.xlu0 %1054
        %1057 = vset.pattern.permute.xlu0 1
        %1058 = vperm.xlu0 %1057, %v537
        %v1059 = vpop.permute.xlu0 %1058
        %1061 = vset.pattern.permute.xlu0 1
        %1062 = vperm.xlu0 %1061, %v558
        %v1063 = vpop.permute.xlu0 %1062
        %1065 = vset.pattern.permute.xlu0 1
        %1066 = vperm.xlu0 %1065, %v559
        %v1067 = vpop.permute.xlu0 %1066
        %v1069 = vsel %vm791, %v1055, %v1063
        %v1070 = vsel %vm791, %v1059, %v1067
        %v1071 = vld [vmem:[#allocation2] sm:$0xff]
        %v1072 = vld [vmem:[#allocation2 + $0x8] sm:$0xff]
        %v1073 = vmul.f32 %v1069, %v1047
        %v1074 = vmul.f32 %v1070, %v1050
        %v1075 = vadd.f32 %v1071, %v1073
        %v1076 = vadd.f32 %v1072, %v1074
        %1077 = vst [vmem:[#allocation2] sm:$0xff] %v1075
        %1078 = vst [vmem:[#allocation2 + $0x8] sm:$0xff] %v1076
        %s1079 = scalar_lea.vmem [#allocation3], 128
        %v1080 = vld [vmem:[%s1079] sm:$0xf]
        %v1081 = vld [vmem:[%s1079 + $0x4] sm:$0xf]
        %v1082 = vld [vmem:[%s1079 + $0x8] sm:$0xf]
        %v1083 = vld [vmem:[%s1079 + $0xc] sm:$0xf]
        %v1084 = vld [vmem:[%s1079 + $0x10] sm:$0xf]
        %v1085 = vld [vmem:[%s1079 + $0x14] sm:$0xf]
        %v1086 = vld [vmem:[%s1079 + $0x18] sm:$0xf]
        %v1087 = vld [vmem:[%s1079 + $0x1c] sm:$0xf]
        %v1088 = vld [vmem:[%s1079 + $0x20] sm:$0xf]
        %v1089 = vld [vmem:[%s1079 + $0x24] sm:$0xf]
        %v1090 = vld [vmem:[%s1079 + $0x28] sm:$0xf]
        %v1091 = vld [vmem:[%s1079 + $0x2c] sm:$0xf]
        %v1092 = vld [vmem:[%s1079 + $0x30] sm:$0xf]
        %v1093 = vld [vmem:[%s1079 + $0x34] sm:$0xf]
        %v1094 = vld [vmem:[%s1079 + $0x38] sm:$0xf]
        %v1095 = vld [vmem:[%s1079 + $0x3c] sm:$0xf]
        %s1096 = scalar_lea.vmem %s2, 2
        %v1097 = vld [vmem:[%s1096] sm:$0x1]
        %v1099 = vlaneseq
        %v1100 = vshrl.u32 %v1099, 7
        %v1101 = vsub.s32 0, %v1100
        %v1102 = vrot.slane %v1097, %v1101
        %v1120 = vunpack.c.l.b16 %v1080
        %v1121 = vunpack.c.l.b16 %v1081
        %v1122 = vunpack.c.l.b16 %v1082
        %v1123 = vunpack.c.l.b16 %v1083
        %v1124 = vunpack.c.l.b16 %v1084
        %v1125 = vunpack.c.l.b16 %v1085
        %v1126 = vunpack.c.l.b16 %v1086
        %v1127 = vunpack.c.l.b16 %v1087
        %v1128 = vunpack.c.l.b16 %v1088
        %v1129 = vunpack.c.l.b16 %v1089
        %v1130 = vunpack.c.l.b16 %v1090
        %v1131 = vunpack.c.l.b16 %v1091
        %v1132 = vunpack.c.l.b16 %v1092
        %v1133 = vunpack.c.l.b16 %v1093
        %v1134 = vunpack.c.l.b16 %v1094
        %v1135 = vunpack.c.l.b16 %v1095
        %v1136 = vpack.c.b16 %v1121, %v1120
        %v1137 = vpack.c.b16 %v1123, %v1122
        %v1138 = vpack.c.b16 %v1125, %v1124
        %v1139 = vpack.c.b16 %v1127, %v1126
        %v1140 = vpack.c.b16 %v1129, %v1128
        %v1141 = vpack.c.b16 %v1131, %v1130
        %v1142 = vpack.c.b16 %v1133, %v1132
        %v1143 = vpack.c.b16 %v1135, %v1134
        %1152 = vmatprep.subr.bf16.mxu0 0
        %1153 = vmatpush1.bf16.msra.mxu0 %v1143
        %1154 = vmatprep.subr.bf16.mxu0 0
        %1155 = vmatpush1.bf16.msra.mxu0 %v1142
        %1156 = vmatprep.subr.bf16.mxu0 0
        %1157 = vmatpush1.bf16.msra.mxu0 %v1141
        %1158 = vmatprep.subr.bf16.mxu0 0
        %1159 = vmatpush1.bf16.msra.mxu0 %v1140
        %1160 = vmatprep.subr.bf16.mxu0 0
        %1161 = vmatpush1.bf16.msra.mxu0 %v1139
        %1162 = vmatprep.subr.bf16.mxu0 0
        %1163 = vmatpush1.bf16.msra.mxu0 %v1138
        %1164 = vmatprep.subr.bf16.mxu0 0
        %1165 = vmatpush1.bf16.msra.mxu0 %v1137
        %1166 = vmatprep.subr.bf16.mxu0 0
        %1167 = vmatpush1.bf16.msra.mxu0 %v1136
        %1168 = vmatprep.subr.bf16.mxu0 0
        %1169 = vmatpush2.bf16.msra.mxu0 0
        %1170 = vmatprep.subr.bf16.mxu0 0
        %1171 = vmatpush2.bf16.msra.mxu0 0
        %1172 = vmatprep.subr.bf16.mxu0 0
        %1173 = vmatpush2.bf16.msra.mxu0 0
        %1174 = vmatprep.subr.bf16.mxu0 0
        %1175 = vmatpush2.bf16.msra.mxu0 0
        %1176 = vmatprep.subr.bf16.mxu0 0
        %1177 = vmatpush2.bf16.msra.mxu0 0
        %1178 = vmatprep.subr.bf16.mxu0 0
        %1179 = vmatpush2.bf16.msra.mxu0 0
        %1180 = vmatprep.subr.bf16.mxu0 0
        %1181 = vmatpush2.bf16.msra.mxu0 0
        %1182 = vmatprep.subr.bf16.mxu0 0
        %1183 = vmatpush2.bf16.msra.mxu0 0
        %1184 = vmatprep.mubr.bf16.mxu0 0
        %1185 = vmatmul.mubr.bf16.gmra.mxu0 %v388
        %v1186 = vpop.f32.mrf.mxu0
        %v1187 = vadd.f32 %v1102, %v1186
        %v1188 = vpop.f32.mrf.mxu0
        %v1189 = vpop.f32.mrf.mxu0
        %v1190 = vadd.f32 %v1102, %v1189
        %v1191 = vpop.f32.mrf.mxu0
        %1192 = vdwg.mxu0
        %v1193 = vmax.f32 %v1187, 0.0
        %v1194 = vmax.f32 %v1190, 0.0
        %v1195 = vpack.c.bf16 %v1194, %v1193
        %s1196 = scalar_lea.vmem [#allocation5], 128
        %v1197 = vld [vmem:[%s1196] sm:$0xf]
        %v1198 = vld [vmem:[%s1196 + $0x4] sm:$0xf]
        %v1199 = vld [vmem:[%s1196 + $0x8] sm:$0xf]
        %v1200 = vld [vmem:[%s1196 + $0xc] sm:$0xf]
        %v1201 = vld [vmem:[%s1196 + $0x10] sm:$0xf]
        %v1202 = vld [vmem:[%s1196 + $0x14] sm:$0xf]
        %v1203 = vld [vmem:[%s1196 + $0x18] sm:$0xf]
        %v1204 = vld [vmem:[%s1196 + $0x1c] sm:$0xf]
        %v1205 = vld [vmem:[%s1196 + $0x20] sm:$0xf]
        %v1206 = vld [vmem:[%s1196 + $0x24] sm:$0xf]
        %v1207 = vld [vmem:[%s1196 + $0x28] sm:$0xf]
        %v1208 = vld [vmem:[%s1196 + $0x2c] sm:$0xf]
        %v1209 = vld [vmem:[%s1196 + $0x30] sm:$0xf]
        %v1210 = vld [vmem:[%s1196 + $0x34] sm:$0xf]
        %v1211 = vld [vmem:[%s1196 + $0x38] sm:$0xf]
        %v1212 = vld [vmem:[%s1196 + $0x3c] sm:$0xf]
        %s1213 = scalar_lea.vmem %s4, 2
        %v1214 = vld [vmem:[%s1213] sm:$0x1]
        %v1216 = vlaneseq
        %v1217 = vshrl.u32 %v1216, 7
        %v1218 = vsub.s32 0, %v1217
        %v1219 = vrot.slane %v1214, %v1218
        %v1237 = vunpack.c.l.b16 %v1197
        %v1238 = vunpack.c.l.b16 %v1198
        %v1239 = vunpack.c.l.b16 %v1199
        %v1240 = vunpack.c.l.b16 %v1200
        %v1241 = vunpack.c.l.b16 %v1201
        %v1242 = vunpack.c.l.b16 %v1202
        %v1243 = vunpack.c.l.b16 %v1203
        %v1244 = vunpack.c.l.b16 %v1204
        %v1245 = vunpack.c.l.b16 %v1205
        %v1246 = vunpack.c.l.b16 %v1206
        %v1247 = vunpack.c.l.b16 %v1207
        %v1248 = vunpack.c.l.b16 %v1208
        %v1249 = vunpack.c.l.b16 %v1209
        %v1250 = vunpack.c.l.b16 %v1210
        %v1251 = vunpack.c.l.b16 %v1211
        %v1252 = vunpack.c.l.b16 %v1212
        %v1253 = vpack.c.b16 %v1238, %v1237
        %v1254 = vpack.c.b16 %v1240, %v1239
        %v1255 = vpack.c.b16 %v1242, %v1241
        %v1256 = vpack.c.b16 %v1244, %v1243
        %v1257 = vpack.c.b16 %v1246, %v1245
        %v1258 = vpack.c.b16 %v1248, %v1247
        %v1259 = vpack.c.b16 %v1250, %v1249
        %v1260 = vpack.c.b16 %v1252, %v1251
        %1269 = vmatprep.subr.bf16.mxu0 0
        %1270 = vmatpush1.bf16.msra.mxu0 %v1260
        %1271 = vmatprep.subr.bf16.mxu0 0
        %1272 = vmatpush1.bf16.msra.mxu0 %v1259
        %1273 = vmatprep.subr.bf16.mxu0 0
        %1274 = vmatpush1.bf16.msra.mxu0 %v1258
        %1275 = vmatprep.subr.bf16.mxu0 0
        %1276 = vmatpush1.bf16.msra.mxu0 %v1257
        %1277 = vmatprep.subr.bf16.mxu0 0
        %1278 = vmatpush1.bf16.msra.mxu0 %v1256
        %1279 = vmatprep.subr.bf16.mxu0 0
        %1280 = vmatpush1.bf16.msra.mxu0 %v1255
        %1281 = vmatprep.subr.bf16.mxu0 0
        %1282 = vmatpush1.bf16.msra.mxu0 %v1254
        %1283 = vmatprep.subr.bf16.mxu0 0
        %1284 = vmatpush1.bf16.msra.mxu0 %v1253
        %1285 = vmatprep.subr.bf16.mxu0 0
        %1286 = vmatpush2.bf16.msra.mxu0 0
        %1287 = vmatprep.subr.bf16.mxu0 0
        %1288 = vmatpush2.bf16.msra.mxu0 0
        %1289 = vmatprep.subr.bf16.mxu0 0
        %1290 = vmatpush2.bf16.msra.mxu0 0
        %1291 = vmatprep.subr.bf16.mxu0 0
        %1292 = vmatpush2.bf16.msra.mxu0 0
        %1293 = vmatprep.subr.bf16.mxu0 0
        %1294 = vmatpush2.bf16.msra.mxu0 0
        %1295 = vmatprep.subr.bf16.mxu0 0
        %1296 = vmatpush2.bf16.msra.mxu0 0
        %1297 = vmatprep.subr.bf16.mxu0 0
        %1298 = vmatpush2.bf16.msra.mxu0 0
        %1299 = vmatprep.subr.bf16.mxu0 0
        %1300 = vmatpush2.bf16.msra.mxu0 0
        %1301 = vmatprep.mubr.bf16.mxu0 0
        %1302 = vmatmul.mubr.bf16.gmra.mxu0 %v1195
        %v1303 = vpop.f32.mrf.mxu0
        %v1304 = vadd.f32 %v1219, %v1303
        %v1305 = vpop.f32.mrf.mxu0
        %v1306 = vpop.f32.mrf.mxu0
        %v1307 = vadd.f32 %v1219, %v1306
        %v1308 = vpop.f32.mrf.mxu0
        %1309 = vdwg.mxu0
        %1310 = vset.pattern.permute.xlu0 2
        %1311 = vperm.xlu0 %1310, %v536
        %v1312 = vpop.permute.xlu0 %1311
        %1314 = vset.pattern.permute.xlu0 2
        %1315 = vperm.xlu0 %1314, %v537
        %v1316 = vpop.permute.xlu0 %1315
        %1318 = vset.pattern.permute.xlu0 2
        %1319 = vperm.xlu0 %1318, %v558
        %v1320 = vpop.permute.xlu0 %1319
        %1322 = vset.pattern.permute.xlu0 2
        %1323 = vperm.xlu0 %1322, %v559
        %v1324 = vpop.permute.xlu0 %1323
        %v1326 = vsel %vm791, %v1312, %v1320
        %v1327 = vsel %vm791, %v1316, %v1324
        %v1328 = vld [vmem:[#allocation2] sm:$0xff]
        %v1329 = vld [vmem:[#allocation2 + $0x8] sm:$0xff]
        %v1330 = vmul.f32 %v1326, %v1304
        %v1331 = vmul.f32 %v1327, %v1307
        %v1332 = vadd.f32 %v1328, %v1330
        %v1333 = vadd.f32 %v1329, %v1331
        %1334 = vst [vmem:[#allocation2] sm:$0xff] %v1332
        %1335 = vst [vmem:[#allocation2 + $0x8] sm:$0xff] %v1333
        %s1336 = scalar_lea.vmem [#allocation3], 192
        %v1337 = vld [vmem:[%s1336] sm:$0xf]
        %v1338 = vld [vmem:[%s1336 + $0x4] sm:$0xf]
        %v1339 = vld [vmem:[%s1336 + $0x8] sm:$0xf]
        %v1340 = vld [vmem:[%s1336 + $0xc] sm:$0xf]
        %v1341 = vld [vmem:[%s1336 + $0x10] sm:$0xf]
        %v1342 = vld [vmem:[%s1336 + $0x14] sm:$0xf]
        %v1343 = vld [vmem:[%s1336 + $0x18] sm:$0xf]
        %v1344 = vld [vmem:[%s1336 + $0x1c] sm:$0xf]
        %v1345 = vld [vmem:[%s1336 + $0x20] sm:$0xf]
        %v1346 = vld [vmem:[%s1336 + $0x24] sm:$0xf]
        %v1347 = vld [vmem:[%s1336 + $0x28] sm:$0xf]
        %v1348 = vld [vmem:[%s1336 + $0x2c] sm:$0xf]
        %v1349 = vld [vmem:[%s1336 + $0x30] sm:$0xf]
        %v1350 = vld [vmem:[%s1336 + $0x34] sm:$0xf]
        %v1351 = vld [vmem:[%s1336 + $0x38] sm:$0xf]
        %v1352 = vld [vmem:[%s1336 + $0x3c] sm:$0xf]
        %s1353 = scalar_lea.vmem %s2, 3
        %v1354 = vld [vmem:[%s1353] sm:$0x1]
        %v1356 = vlaneseq
        %v1357 = vshrl.u32 %v1356, 7
        %v1358 = vsub.s32 0, %v1357
        %v1359 = vrot.slane %v1354, %v1358
        %v1377 = vunpack.c.l.b16 %v1337
        %v1378 = vunpack.c.l.b16 %v1338
        %v1379 = vunpack.c.l.b16 %v1339
        %v1380 = vunpack.c.l.b16 %v1340
        %v1381 = vunpack.c.l.b16 %v1341
        %v1382 = vunpack.c.l.b16 %v1342
        %v1383 = vunpack.c.l.b16 %v1343
        %v1384 = vunpack.c.l.b16 %v1344
        %v1385 = vunpack.c.l.b16 %v1345
        %v1386 = vunpack.c.l.b16 %v1346
        %v1387 = vunpack.c.l.b16 %v1347
        %v1388 = vunpack.c.l.b16 %v1348
        %v1389 = vunpack.c.l.b16 %v1349
        %v1390 = vunpack.c.l.b16 %v1350
        %v1391 = vunpack.c.l.b16 %v1351
        %v1392 = vunpack.c.l.b16 %v1352
        %v1393 = vpack.c.b16 %v1378, %v1377
        %v1394 = vpack.c.b16 %v1380, %v1379
        %v1395 = vpack.c.b16 %v1382, %v1381
        %v1396 = vpack.c.b16 %v1384, %v1383
        %v1397 = vpack.c.b16 %v1386, %v1385
        %v1398 = vpack.c.b16 %v1388, %v1387
        %v1399 = vpack.c.b16 %v1390, %v1389
        %v1400 = vpack.c.b16 %v1392, %v1391
        %1409 = vmatprep.subr.bf16.mxu0 0
        %1410 = vmatpush1.bf16.msra.mxu0 %v1400
        %1411 = vmatprep.subr.bf16.mxu0 0
        %1412 = vmatpush1.bf16.msra.mxu0 %v1399
        %1413 = vmatprep.subr.bf16.mxu0 0
        %1414 = vmatpush1.bf16.msra.mxu0 %v1398
        %1415 = vmatprep.subr.bf16.mxu0 0
        %1416 = vmatpush1.bf16.msra.mxu0 %v1397
        %1417 = vmatprep.subr.bf16.mxu0 0
        %1418 = vmatpush1.bf16.msra.mxu0 %v1396
        %1419 = vmatprep.subr.bf16.mxu0 0
        %1420 = vmatpush1.bf16.msra.mxu0 %v1395
        %1421 = vmatprep.subr.bf16.mxu0 0
        %1422 = vmatpush1.bf16.msra.mxu0 %v1394
        %1423 = vmatprep.subr.bf16.mxu0 0
        %1424 = vmatpush1.bf16.msra.mxu0 %v1393
        %1425 = vmatprep.subr.bf16.mxu0 0
        %1426 = vmatpush2.bf16.msra.mxu0 0
        %1427 = vmatprep.subr.bf16.mxu0 0
        %1428 = vmatpush2.bf16.msra.mxu0 0
        %1429 = vmatprep.subr.bf16.mxu0 0
        %1430 = vmatpush2.bf16.msra.mxu0 0
        %1431 = vmatprep.subr.bf16.mxu0 0
        %1432 = vmatpush2.bf16.msra.mxu0 0
        %1433 = vmatprep.subr.bf16.mxu0 0
        %1434 = vmatpush2.bf16.msra.mxu0 0
        %1435 = vmatprep.subr.bf16.mxu0 0
        %1436 = vmatpush2.bf16.msra.mxu0 0
        %1437 = vmatprep.subr.bf16.mxu0 0
        %1438 = vmatpush2.bf16.msra.mxu0 0
        %1439 = vmatprep.subr.bf16.mxu0 0
        %1440 = vmatpush2.bf16.msra.mxu0 0
        %1441 = vmatprep.mubr.bf16.mxu0 0
        %1442 = vmatmul.mubr.bf16.gmra.mxu0 %v388
        %v1443 = vpop.f32.mrf.mxu0
        %v1444 = vadd.f32 %v1359, %v1443
        %v1445 = vpop.f32.mrf.mxu0
        %v1446 = vpop.f32.mrf.mxu0
        %v1447 = vadd.f32 %v1359, %v1446
        %v1448 = vpop.f32.mrf.mxu0
        %1449 = vdwg.mxu0
        %v1450 = vmax.f32 %v1444, 0.0
        %v1451 = vmax.f32 %v1447, 0.0
        %v1452 = vpack.c.bf16 %v1451, %v1450
        %s1453 = scalar_lea.vmem [#allocation5], 192
        %v1454 = vld [vmem:[%s1453] sm:$0xf]
        %v1455 = vld [vmem:[%s1453 + $0x4] sm:$0xf]
        %v1456 = vld [vmem:[%s1453 + $0x8] sm:$0xf]
        %v1457 = vld [vmem:[%s1453 + $0xc] sm:$0xf]
        %v1458 = vld [vmem:[%s1453 + $0x10] sm:$0xf]
        %v1459 = vld [vmem:[%s1453 + $0x14] sm:$0xf]
        %v1460 = vld [vmem:[%s1453 + $0x18] sm:$0xf]
        %v1461 = vld [vmem:[%s1453 + $0x1c] sm:$0xf]
        %v1462 = vld [vmem:[%s1453 + $0x20] sm:$0xf]
        %v1463 = vld [vmem:[%s1453 + $0x24] sm:$0xf]
        %v1464 = vld [vmem:[%s1453 + $0x28] sm:$0xf]
        %v1465 = vld [vmem:[%s1453 + $0x2c] sm:$0xf]
        %v1466 = vld [vmem:[%s1453 + $0x30] sm:$0xf]
        %v1467 = vld [vmem:[%s1453 + $0x34] sm:$0xf]
        %v1468 = vld [vmem:[%s1453 + $0x38] sm:$0xf]
        %v1469 = vld [vmem:[%s1453 + $0x3c] sm:$0xf]
        %s1470 = scalar_lea.vmem %s4, 3
        %v1471 = vld [vmem:[%s1470] sm:$0x1]
        %v1473 = vlaneseq
        %v1474 = vshrl.u32 %v1473, 7
        %v1475 = vsub.s32 0, %v1474
        %v1476 = vrot.slane %v1471, %v1475
        %v1494 = vunpack.c.l.b16 %v1454
        %v1495 = vunpack.c.l.b16 %v1455
        %v1496 = vunpack.c.l.b16 %v1456
        %v1497 = vunpack.c.l.b16 %v1457
        %v1498 = vunpack.c.l.b16 %v1458
        %v1499 = vunpack.c.l.b16 %v1459
        %v1500 = vunpack.c.l.b16 %v1460
        %v1501 = vunpack.c.l.b16 %v1461
        %v1502 = vunpack.c.l.b16 %v1462
        %v1503 = vunpack.c.l.b16 %v1463
        %v1504 = vunpack.c.l.b16 %v1464
        %v1505 = vunpack.c.l.b16 %v1465
        %v1506 = vunpack.c.l.b16 %v1466
        %v1507 = vunpack.c.l.b16 %v1467
        %v1508 = vunpack.c.l.b16 %v1468
        %v1509 = vunpack.c.l.b16 %v1469
        %v1510 = vpack.c.b16 %v1495, %v1494
        %v1511 = vpack.c.b16 %v1497, %v1496
        %v1512 = vpack.c.b16 %v1499, %v1498
        %v1513 = vpack.c.b16 %v1501, %v1500
        %v1514 = vpack.c.b16 %v1503, %v1502
        %v1515 = vpack.c.b16 %v1505, %v1504
        %v1516 = vpack.c.b16 %v1507, %v1506
        %v1517 = vpack.c.b16 %v1509, %v1508
        %1526 = vmatprep.subr.bf16.mxu0 0
        %1527 = vmatpush1.bf16.msra.mxu0 %v1517
        %1528 = vmatprep.subr.bf16.mxu0 0
        %1529 = vmatpush1.bf16.msra.mxu0 %v1516
        %1530 = vmatprep.subr.bf16.mxu0 0
        %1531 = vmatpush1.bf16.msra.mxu0 %v1515
        %1532 = vmatprep.subr.bf16.mxu0 0
        %1533 = vmatpush1.bf16.msra.mxu0 %v1514
        %1534 = vmatprep.subr.bf16.mxu0 0
        %1535 = vmatpush1.bf16.msra.mxu0 %v1513
        %1536 = vmatprep.subr.bf16.mxu0 0
        %1537 = vmatpush1.bf16.msra.mxu0 %v1512
        %1538 = vmatprep.subr.bf16.mxu0 0
        %1539 = vmatpush1.bf16.msra.mxu0 %v1511
        %1540 = vmatprep.subr.bf16.mxu0 0
        %1541 = vmatpush1.bf16.msra.mxu0 %v1510
        %1542 = vmatprep.subr.bf16.mxu0 0
        %1543 = vmatpush2.bf16.msra.mxu0 0
        %1544 = vmatprep.subr.bf16.mxu0 0
        %1545 = vmatpush2.bf16.msra.mxu0 0
        %1546 = vmatprep.subr.bf16.mxu0 0
        %1547 = vmatpush2.bf16.msra.mxu0 0
        %1548 = vmatprep.subr.bf16.mxu0 0
        %1549 = vmatpush2.bf16.msra.mxu0 0
        %1550 = vmatprep.subr.bf16.mxu0 0
        %1551 = vmatpush2.bf16.msra.mxu0 0
        %1552 = vmatprep.subr.bf16.mxu0 0
        %1553 = vmatpush2.bf16.msra.mxu0 0
        %1554 = vmatprep.subr.bf16.mxu0 0
        %1555 = vmatpush2.bf16.msra.mxu0 0
        %1556 = vmatprep.subr.bf16.mxu0 0
        %1557 = vmatpush2.bf16.msra.mxu0 0
        %1558 = vmatprep.mubr.bf16.mxu0 0
        %1559 = vmatmul.mubr.bf16.gmra.mxu0 %v1452
        %v1560 = vpop.f32.mrf.mxu0
        %v1561 = vadd.f32 %v1476, %v1560
        %v1562 = vpop.f32.mrf.mxu0
        %v1563 = vpop.f32.mrf.mxu0
        %v1564 = vadd.f32 %v1476, %v1563
        %v1565 = vpop.f32.mrf.mxu0
        %1566 = vdwg.mxu0
        %1567 = vset.pattern.permute.xlu0 3
        %1568 = vperm.xlu0 %1567, %v536
        %v1569 = vpop.permute.xlu0 %1568
        %1571 = vset.pattern.permute.xlu0 3
        %1572 = vperm.xlu0 %1571, %v537
        %v1573 = vpop.permute.xlu0 %1572
        %1575 = vset.pattern.permute.xlu0 3
        %1576 = vperm.xlu0 %1575, %v558
        %v1577 = vpop.permute.xlu0 %1576
        %1579 = vset.pattern.permute.xlu0 3
        %1580 = vperm.xlu0 %1579, %v559
        %v1581 = vpop.permute.xlu0 %1580
        %v1583 = vsel %vm791, %v1569, %v1577
        %v1584 = vsel %vm791, %v1573, %v1581
        %v1585 = vld [vmem:[#allocation2] sm:$0xff]
        %v1586 = vld [vmem:[#allocation2 + $0x8] sm:$0xff]
        %v1587 = vmul.f32 %v1583, %v1561
        %v1588 = vmul.f32 %v1584, %v1564
        %v1589 = vadd.f32 %v1585, %v1587
        %v1590 = vadd.f32 %v1586, %v1588
        %1591 = vst [vmem:[#allocation2] sm:$0xff] %v1589
        %1592 = vst [vmem:[#allocation2 + $0x8] sm:$0xff] %v1590
        %v1593 = vld [vmem:[#allocation2] sm:$0xff]
        %v1594 = vld [vmem:[#allocation2 + $0x8] sm:$0xff]
        %v1595 = vld [vmem:[%s7] sm:$0x1]
        %v1597 = vlaneseq
        %v1598 = vshrl.u32 %v1597, 7
        %v1599 = vsub.s32 0, %v1598
        %v1600 = vrot.slane %v1595, %v1599
        %v1602 = vadd.f32 %v1593, %v1600
        %v1603 = vadd.f32 %v1594, %v1600
        %v1604 = vsub.f32 0.0, %v1602
        %v1605 = vsub.f32 0.0, %v1603
        %v1606 = vmul.f32 %v1604, 1.442695
        %v1607 = vpow.pop %v1606
        %v1608 = vmul.f32 %v1605, 1.442695
        %v1609 = vpow.pop %v1608
        %v1610 = vadd.f32 %v1607, 1.0
        %v1611 = vadd.f32 %v1609, 1.0
        %v1612 = vrcp.pop %v1610
        %v1613 = vmul.f32 1.0, %v1612
        %v1614 = vrcp.pop %v1611
        %v1615 = vmul.f32 1.0, %v1614
        %vm1616 = vcmp.eq.s32.totalorder %v514, 8
        %v1617 = vsel %vm1616, 1, 0
        %vm1618 = vcmp.eq.s32.totalorder %v1617, 1
        %v1619 = vsel %vm1618, %v1613, %v1602
        %v1620 = vsel %vm1618, %v1615, %v1603
        %1621 = vst [vmem:[%s351] sm:$0xff] %v1619
        %1622 = vst [vmem:[%s351 + $0x8] sm:$0xff] %v1620
        %s1623 = smul.u32 2, %s21
        %p1624 = scmp.lt.s32.totalorder %s1623, 3
        %s1625 = scalar_select %p1624, %s1623, 3
        %s1626 = smul.addr %s1625, 8
        %s1627 = scalar_lea.vmem %s8, %s1626
        // Predicated region
        $region65: #{fwd.1} parent=51 // pred_check
          %p1628 = pneg %p212
        $region66: #{fwd.1} parent=51 // pred_check_branch
          %1630 = sbr.rel (%p1628) target = $region68
        $region67: #{fwd.1} parent=51 // pred_region
          %s1631 = smul.u32 2, %s21
        $region68: #{fwd.1} parent=51 // pred_fallthru
          _
      $region52: #{fwd.1} parent=5 // pred_fallthru
        _
      %p1632 = scmp.le.s32.totalorder 2, %s16
      // Predicated region
      $region69: #{fwd.1} parent=5 // pred_check
        %p1633 = pneg %p1632
      $region70: #{fwd.1} parent=5 // pred_check_branch
        %1635 = sbr.rel (%p1633) target = $region72
      $region71: #{fwd.1} parent=5 // pred_region
        %s1636 = ssub.s32 %s16, 2
        // Predicated region
        $region73: #{fwd.1} parent=71 // pred_check
          %p1637 = pneg %p218
        $region74: #{fwd.1} parent=71 // pred_check_branch
          %1639 = sbr.rel (%p1637) target = $region76
        $region75: #{fwd.1} parent=71 // pred_region
          %s1640 = smul.u32 2, %s22
          %p1641 = scmp.lt.s32.totalorder %s1640, 3
          %s1642 = scalar_select %p1641, %s1640, 3
          %s1643 = smul.addr %s1642, 8
          %s1644 = scalar_lea.vmem %s8, %s1643
        $region76: #{fwd.1} parent=71 // pred_fallthru
          _
      $region72: #{fwd.1} parent=5 // pred_fallthru
        _
    $region6: #{fwd.1} parent=1 // loop_footer
      %s20 = sadd.s32 1, %s16
    $region7: #{fwd.1} parent=1 // loop_footer_branch
      %15 = sbr.rel target = $region3
    $region8: #{fwd.1} parent=1 // loop_exit
      _
    %1645 = vsyncpa [#allocation4], 1
    %s1646 = scalar_lea.sflag [#allocation4], 1
    %1647 = vsyncpa %s1646, 1
    %1648 = vsyncpa [#allocation6], 1

</llo_original>
